<compile_context>
chip_gen: v7x
topology: tpu7x:2x2x1
jax: 0.10.0
libtpu: 0.0.40
codegen_flags: <defaults>
</compile_context>

<pallas_src>
import jax
import jax.numpy as jnp
import numpy as np
from jax.experimental import pallas as pl
from jax.experimental.pallas import tpu as pltpu


def _bilstm_kernel(x_ref, h0_ref, c0_ref,
                   wih_ref, whh_ref, b_ref,
                   wo_ref, bo_ref,
                   out_ref, xp_ref):
    # Shapes (static):
    #   x_ref   (T*B, 2I)   row block t = [x[t] | x[T-1-t]]
    #   h0_ref  (B, 2H)     [h0_fwd | h0_bwd]
    #   c0_ref  (B, 8H)     c0 placed at the f-gate lanes [2H:4H)
    #   wih_ref (2I, 8H), whh_ref (2H, 8H), b_ref (1, 8H)
    #   wo_ref  (2H, O),  bo_ref (1, O)
    #   xp_ref  (T*B, 8H)   VMEM scratch for the hoisted input projection
    TB = x_ref.shape[0]
    B, twoH = h0_ref.shape
    H = twoH // 2
    T = TB // B
    # Cyclic lane shift of -2H over the 8H gate lanes (pltpu.roll follows the
    # jnp.roll convention: element at lane j moves to lane (j + shift) mod 8H).
    ROT = 6 * H

    # ---- hoisted fused input projection (both directions, all gates): one dot ----
    xp_ref[...] = (jnp.dot(x_ref[...], wih_ref[...],
                           preferred_element_type=jnp.float32)
                   + b_ref[...])                               # (T*B, 8H)

    h = h0_ref[...]        # (B, 2H)  [h_f | h_b]
    c = c0_ref[...]        # (B, 8H)  valid at f-gate lanes [2H:4H)

    # Fully unrolled serial recurrence (T static).  Gate lane layout per step:
    #   [ o_f o_b | f_f f_b | i_f i_b | g_f g_b ]  (each sub-block H lanes)
    for t in range(T):
        pre = xp_ref[t * B:(t + 1) * B, :]                      # (B, 8H)
        g_all = pre + jnp.dot(h, whh_ref[...],
                              preferred_element_type=jnp.float32)
        # Whole-vreg nonlinearities; per-gate lanes selected with rolls (XLU)
        # instead of 32-lane sub-vreg slices.
        sig = jax.nn.sigmoid(g_all)            # valid at o / f / i lanes
        tnh = jnp.tanh(g_all)                  # valid at g lanes [6H:8H)
        ig = sig * pltpu.roll(tnh, ROT, axis=1)       # i*tanh(g) at i lanes [4H:6H)
        c = sig * c + pltpu.roll(ig, ROT, axis=1)     # f*c + i*g  at f lanes [2H:4H)
        h_full = sig * pltpu.roll(jnp.tanh(c), ROT, axis=1)   # o*tanh(c) at [0:2H)
        h = h_full[:, :twoH]                   # (B, 2H) prefix slice, lane offset 0

    # ---- h2o linear (concat-free: rows 0:H of wo hit h_f, rows H:2H hit h_b) ----
    logits = (jnp.dot(h, wo_ref[...], preferred_element_type=jnp.float32)
              + bo_ref[...])                                    # (B, O)
    m = jnp.max(logits, axis=1, keepdims=True)
    shifted = logits - m
    lse = jnp.log(jnp.sum(jnp.exp(shifted), axis=1, keepdims=True))
    out_ref[...] = (shifted - lse).astype(out_ref.dtype)


def flbilstm_forward(name, hidden, params):
    """name: (B, T, I) batch-first.  hidden: (h0, c0), each (2, B, H).
    Returns (log_probs (B, O), hidden) — same contract as FLBiLSTM.forward
    (the module returns the *input* hidden unchanged)."""
    h0, c0 = hidden
    B, T, I = name.shape
    H = h0.shape[-1]
    O = params["b_o"].shape[-1]

    # Layout plumbing in the wrapper (free): time-major, then pair each forward
    # timestep with the matching backward timestep along the feature axis.
    x_tm = jnp.transpose(name, (1, 0, 2))                        # (T, B, I)
    x_cat = jnp.concatenate([x_tm, x_tm[::-1]], axis=-1)         # (T, B, 2I)
    x_cat = x_cat.reshape(T * B, 2 * I)

    h0_cat = jnp.concatenate([h0[0], h0[1]], axis=1)             # (B, 2H)
    c0_g = jnp.zeros((B, 8 * H), jnp.float32)                    # c at f-gate lanes
    c0_g = c0_g.at[:, 2 * H:3 * H].set(c0[0]).at[:, 3 * H:4 * H].set(c0[1])

    inputs = (x_cat, h0_cat, c0_g,
              params["wih"], params["whh"], params["b"],
              params["wo"], params["b_o"])

    vmem = pl.BlockSpec(memory_space=pltpu.MemorySpace.VMEM)
    out = pl.pallas_call(
        _bilstm_kernel,
        out_shape=jax.ShapeDtypeStruct((B, O), jnp.float32),
        in_specs=[vmem] * len(inputs),
        out_specs=vmem,
        scratch_shapes=[pltpu.VMEM((T * B, 8 * H), jnp.float32)],
    )(*inputs)
    return out, hidden


# ----------------------------- parameter handling -----------------------------

def make_raw_params(key, input_size, hidden_size, output_size):
    """Deterministic synthetic parameters with exact nn.LSTM / nn.Linear shapes
    (PyTorch gate order i, f, g, o along the 4H axis)."""
    ks = jax.random.split(key, 10)
    H, I, O = hidden_size, input_size, output_size
    s = 1.0 / np.sqrt(H)

    def u(k, shape):
        return jax.random.uniform(k, shape, jnp.float32, -s, s)

    return {
        "w_ih_f": u(ks[0], (4 * H, I)), "w_hh_f": u(ks[1], (4 * H, H)),
        "b_ih_f": u(ks[2], (4 * H,)),   "b_hh_f": u(ks[3], (4 * H,)),
        "w_ih_b": u(ks[4], (4 * H, I)), "w_hh_b": u(ks[5], (4 * H, H)),
        "b_ih_b": u(ks[6], (4 * H,)),   "b_hh_b": u(ks[7], (4 * H,)),
        "w_o": u(ks[8], (O, 2 * H)),    "b_o": u(ks[9], (O,)),
    }


# Fused gate-column layout over 8H lanes: 4 gate groups x [fwd | bwd], H lanes each:
#   [ o_f | o_b | f_f | f_b | i_f | i_b | g_f | g_b ]
# Chosen so every per-step alignment is the same -2H cyclic lane shift and the new
# hidden state lands at lanes [0:2H).  (PyTorch stacks gates as i, f, g, o.)
_GATE_GROUP = {"o": 0, "f": 1, "i": 2, "g": 3}


def pack_params(raw, input_size, hidden_size, output_size):
    """Pack PyTorch-layout weights into the kernel's fused block-diagonal layout."""
    H, I, O = hidden_size, input_size, output_size
    G = 8 * H

    def gate_rows(w):  # split a (4H, ...) PyTorch gate stack into per-gate chunks
        w = np.asarray(w)
        return {"i": w[0:H], "f": w[H:2 * H], "g": w[2 * H:3 * H], "o": w[3 * H:4 * H]}

    def place_w(w, rows_total, row_off, d):     # d: 0 = fwd, 1 = bwd
        out = np.zeros((rows_total, G), np.float32)
        for gname, rows in gate_rows(w).items():
            col = _GATE_GROUP[gname] * 2 * H + d * H
            out[row_off:row_off + rows.shape[1], col:col + H] = rows.T
        return out

    def place_b(b, d):
        out = np.zeros((1, G), np.float32)
        for gname, rows in gate_rows(np.asarray(b).reshape(4 * H, 1)).items():
            col = _GATE_GROUP[gname] * 2 * H + d * H
            out[0, col:col + H] = rows[:, 0]
        return out

    wih = place_w(raw["w_ih_f"], 2 * I, 0, 0) + place_w(raw["w_ih_b"], 2 * I, I, 1)
    whh = place_w(raw["w_hh_f"], 2 * H, 0, 0) + place_w(raw["w_hh_b"], 2 * H, H, 1)
    b = (place_b(np.asarray(raw["b_ih_f"]) + np.asarray(raw["b_hh_f"]), 0)
         + place_b(np.asarray(raw["b_ih_b"]) + np.asarray(raw["b_hh_b"]), 1))

    return {
        "wih": jnp.asarray(wih),                               # (2I, 8H)
        "whh": jnp.asarray(whh),                               # (2H, 8H)
        "b": jnp.asarray(b),                                   # (1, 8H)
        "wo": jnp.asarray(np.asarray(raw["w_o"]).T),           # (2H, O): rows 0:H <- h_f
        "b_o": jnp.asarray(np.asarray(raw["b_o"]).reshape(1, O)),
    }


def _reference(name, hidden, raw):
    """Pure-JAX reference using the raw PyTorch-layout weights (validates both
    the recurrence math and the kernel's weight packing)."""
    h0, c0 = hidden
    x = jnp.transpose(name, (1, 0, 2))  # (T, B, I)
    T = x.shape[0]
    H = h0.shape[-1]

    def step(x_t, h, c, w_ih, w_hh, b_ih, b_hh):
        g = x_t @ w_ih.T + h @ w_hh.T + b_ih + b_hh        # (B, 4H) gates i,f,g,o
        i = jax.nn.sigmoid(g[:, 0:H])
        f = jax.nn.sigmoid(g[:, H:2 * H])
        gg = jnp.tanh(g[:, 2 * H:3 * H])
        o = jax.nn.sigmoid(g[:, 3 * H:4 * H])
        c_new = f * c + i * gg
        return o * jnp.tanh(c_new), c_new

    h_f, c_f = h0[0], c0[0]
    for t in range(T):
        h_f, c_f = step(x[t], h_f, c_f, raw["w_ih_f"], raw["w_hh_f"],
                        raw["b_ih_f"], raw["b_hh_f"])
    h_b, c_b = h0[1], c0[1]
    for t in range(T - 1, -1, -1):
        h_b, c_b = step(x[t], h_b, c_b, raw["w_ih_b"], raw["w_hh_b"],
                        raw["b_ih_b"], raw["b_hh_b"])

    logits = jnp.concatenate([h_f, h_b], axis=1) @ raw["w_o"].T + raw["b_o"]
    return jax.nn.log_softmax(logits, axis=1)


if __name__ == "__main__":
    B, T, I, H, O = 8, 8, 16, 32, 16   # 8H = 256 fused gate lanes (2 lane-dense vregs)

    key = jax.random.PRNGKey(0)
    k_x, k_h, k_c, k_p = jax.random.split(key, 4)
    name = jax.random.normal(k_x, (B, T, I), jnp.float32)
    # Non-zero hidden to also exercise the h0 / c0 lane-placement path.
    hidden = (0.1 * jax.random.normal(k_h, (2, B, H), jnp.float32),
              0.1 * jax.random.normal(k_c, (2, B, H), jnp.float32))

    raw = make_raw_params(k_p, I, H, O)
    params = pack_params(raw, I, H, O)

    out, hidden_out = flbilstm_forward(name, hidden, params)
    out = jax.block_until_ready(out)

    ref = np.asarray(_reference(name, hidden, raw))
    assert out.shape == (B, O)
    assert np.allclose(np.asarray(out), ref, atol=1e-4, rtol=1e-4)
    assert hidden_out is hidden   # module returns the input hidden unchanged

    print("KERNEL_OK")
</pallas_src>

<mosaic_0001>
module attributes {stable_mosaic.version = 11 : i64} {
  func.func @_bilstm_kernel(%arg0: memref<64x32xf32, #tpu.memory_space<vmem>>, %arg1: memref<8x64xf32, #tpu.memory_space<vmem>>, %arg2: memref<8x256xf32, #tpu.memory_space<vmem>>, %arg3: memref<32x256xf32, #tpu.memory_space<vmem>>, %arg4: memref<64x256xf32, #tpu.memory_space<vmem>>, %arg5: memref<1x256xf32, #tpu.memory_space<vmem>>, %arg6: memref<64x16xf32, #tpu.memory_space<vmem>>, %arg7: memref<1x16xf32, #tpu.memory_space<vmem>>, %arg8: memref<8x16xf32, #tpu.memory_space<vmem>>, %arg9: memref<64x256xf32, #tpu.memory_space<vmem>>) attributes {dimension_semantics = [], scalar_prefetch = 0 : i64, scratch_operands = 1 : i64, tpu.core_type = #tpu.core_type<tc>} {
    %c0 = arith.constant 0 : index
    %c0_0 = arith.constant 0 : index
    %0 = vector.load %arg0[%c0, %c0_0] : memref<64x32xf32, #tpu.memory_space<vmem>>, vector<64x32xf32>
    %c0_1 = arith.constant 0 : index
    %c0_2 = arith.constant 0 : index
    %1 = vector.load %arg3[%c0_1, %c0_2] : memref<32x256xf32, #tpu.memory_space<vmem>>, vector<32x256xf32>
    %cst = arith.constant dense<0.000000e+00> : vector<64x256xf32>
    %2 = tpu.matmul %0, %1, %cst {dimension_numbers = #tpu.dot_dimension_numbers<[1], [0], [0], [1], [0, 0, 1, 1], [], []>} : vector<64x32xf32>, vector<32x256xf32>, vector<64x256xf32> -> vector<64x256xf32>
    %c0_3 = arith.constant 0 : index
    %c0_4 = arith.constant 0 : index
    %3 = vector.load %arg5[%c0_3, %c0_4] : memref<1x256xf32, #tpu.memory_space<vmem>>, vector<1x256xf32>
    %4 = vector.broadcast %3 : vector<1x256xf32> to vector<64x256xf32>
    %5 = arith.addf %2, %4 : vector<64x256xf32>
    %c0_5 = arith.constant 0 : index
    %c0_6 = arith.constant 0 : index
    %6 = vector.load %arg9[%c0_5, %c0_6] : memref<64x256xf32, #tpu.memory_space<vmem>>, vector<64x256xf32>
    tpu.vector_store %arg9[%c0_5, %c0_6], %5 {strides = array<i32>} : memref<64x256xf32, #tpu.memory_space<vmem>>, vector<64x256xf32>,
    %c0_7 = arith.constant 0 : index
    %c0_8 = arith.constant 0 : index
    %7 = vector.load %arg1[%c0_7, %c0_8] : memref<8x64xf32, #tpu.memory_space<vmem>>, vector<8x64xf32>
    %c0_9 = arith.constant 0 : index
    %c0_10 = arith.constant 0 : index
    %8 = vector.load %arg2[%c0_9, %c0_10] : memref<8x256xf32, #tpu.memory_space<vmem>>, vector<8x256xf32>
    %c0_11 = arith.constant 0 : index
    %c0_12 = arith.constant 0 : index
    %9 = vector.load %arg9[%c0_11, %c0_12] : memref<64x256xf32, #tpu.memory_space<vmem>>, vector<8x256xf32>
    %c0_13 = arith.constant 0 : index
    %c0_14 = arith.constant 0 : index
    %10 = vector.load %arg4[%c0_13, %c0_14] : memref<64x256xf32, #tpu.memory_space<vmem>>, vector<64x256xf32>
    %cst_15 = arith.constant dense<0.000000e+00> : vector<8x256xf32>
    %11 = tpu.matmul %7, %10, %cst_15 {dimension_numbers = #tpu.dot_dimension_numbers<[1], [0], [0], [1], [0, 0, 1, 1], [], []>} : vector<8x64xf32>, vector<64x256xf32>, vector<8x256xf32> -> vector<8x256xf32>
    %12 = arith.addf %9, %11 : vector<8x256xf32>
    %13 = arith.negf %12 : vector<8x256xf32>
    %14 = math.exp %13 : vector<8x256xf32>
    %cst_16 = arith.constant 1.000000e+00 : f32
    %15 = vector.broadcast %cst_16 : f32 to vector<8x256xf32>
    %16 = arith.addf %15, %14 : vector<8x256xf32>
    %17 = arith.divf %15, %16 : vector<8x256xf32>
    %18 = math.tanh %12 : vector<8x256xf32>
    %c192_i32 = arith.constant 192 : i32
    %19 = tpu.dynamic_rotate %18 by %c192_i32 dim 1 : vector<8x256xf32>, i32 -> vector<8x256xf32>
    %20 = arith.mulf %17, %19 : vector<8x256xf32>
    %21 = arith.mulf %17, %8 : vector<8x256xf32>
    %c192_i32_17 = arith.constant 192 : i32
    %22 = tpu.dynamic_rotate %20 by %c192_i32_17 dim 1 : vector<8x256xf32>, i32 -> vector<8x256xf32>
    %23 = arith.addf %21, %22 : vector<8x256xf32>
    %24 = math.tanh %23 : vector<8x256xf32>
    %c192_i32_18 = arith.constant 192 : i32
    %25 = tpu.dynamic_rotate %24 by %c192_i32_18 dim 1 : vector<8x256xf32>, i32 -> vector<8x256xf32>
    %26 = arith.mulf %17, %25 : vector<8x256xf32>
    %27 = vector.extract_strided_slice %26 {offsets = [0, 0], sizes = [8, 64], strides = [1, 1]} : vector<8x256xf32> to vector<8x64xf32>
    %c8 = arith.constant 8 : index
    %c0_19 = arith.constant 0 : index
    %28 = vector.load %arg9[%c8, %c0_19] : memref<64x256xf32, #tpu.memory_space<vmem>>, vector<8x256xf32>
    %c0_20 = arith.constant 0 : index
    %c0_21 = arith.constant 0 : index
    %29 = vector.load %arg4[%c0_20, %c0_21] : memref<64x256xf32, #tpu.memory_space<vmem>>, vector<64x256xf32>
    %cst_22 = arith.constant dense<0.000000e+00> : vector<8x256xf32>
    %30 = tpu.matmul %27, %29, %cst_22 {dimension_numbers = #tpu.dot_dimension_numbers<[1], [0], [0], [1], [0, 0, 1, 1], [], []>} : vector<8x64xf32>, vector<64x256xf32>, vector<8x256xf32> -> vector<8x256xf32>
    %31 = arith.addf %28, %30 : vector<8x256xf32>
    %32 = arith.negf %31 : vector<8x256xf32>
    %33 = math.exp %32 : vector<8x256xf32>
    %cst_23 = arith.constant 1.000000e+00 : f32
    %34 = vector.broadcast %cst_23 : f32 to vector<8x256xf32>
    %35 = arith.addf %34, %33 : vector<8x256xf32>
    %36 = arith.divf %34, %35 : vector<8x256xf32>
    %37 = math.tanh %31 : vector<8x256xf32>
    %c192_i32_24 = arith.constant 192 : i32
    %38 = tpu.dynamic_rotate %37 by %c192_i32_24 dim 1 : vector<8x256xf32>, i32 -> vector<8x256xf32>
    %39 = arith.mulf %36, %38 : vector<8x256xf32>
    %40 = arith.mulf %36, %23 : vector<8x256xf32>
    %c192_i32_25 = arith.constant 192 : i32
    %41 = tpu.dynamic_rotate %39 by %c192_i32_25 dim 1 : vector<8x256xf32>, i32 -> vector<8x256xf32>
    %42 = arith.addf %40, %41 : vector<8x256xf32>
    %43 = math.tanh %42 : vector<8x256xf32>
    %c192_i32_26 = arith.constant 192 : i32
    %44 = tpu.dynamic_rotate %43 by %c192_i32_26 dim 1 : vector<8x256xf32>, i32 -> vector<8x256xf32>
    %45 = arith.mulf %36, %44 : vector<8x256xf32>
    %46 = vector.extract_strided_slice %45 {offsets = [0, 0], sizes = [8, 64], strides = [1, 1]} : vector<8x256xf32> to vector<8x64xf32>
    %c16 = arith.constant 16 : index
    %c0_27 = arith.constant 0 : index
    %47 = vector.load %arg9[%c16, %c0_27] : memref<64x256xf32, #tpu.memory_space<vmem>>, vector<8x256xf32>
    %c0_28 = arith.constant 0 : index
    %c0_29 = arith.constant 0 : index
    %48 = vector.load %arg4[%c0_28, %c0_29] : memref<64x256xf32, #tpu.memory_space<vmem>>, vector<64x256xf32>
    %cst_30 = arith.constant dense<0.000000e+00> : vector<8x256xf32>
    %49 = tpu.matmul %46, %48, %cst_30 {dimension_numbers = #tpu.dot_dimension_numbers<[1], [0], [0], [1], [0, 0, 1, 1], [], []>} : vector<8x64xf32>, vector<64x256xf32>, vector<8x256xf32> -> vector<8x256xf32>
    %50 = arith.addf %47, %49 : vector<8x256xf32>
    %51 = arith.negf %50 : vector<8x256xf32>
    %52 = math.exp %51 : vector<8x256xf32>
    %cst_31 = arith.constant 1.000000e+00 : f32
    %53 = vector.broadcast %cst_31 : f32 to vector<8x256xf32>
    %54 = arith.addf %53, %52 : vector<8x256xf32>
    %55 = arith.divf %53, %54 : vector<8x256xf32>
    %56 = math.tanh %50 : vector<8x256xf32>
    %c192_i32_32 = arith.constant 192 : i32
    %57 = tpu.dynamic_rotate %56 by %c192_i32_32 dim 1 : vector<8x256xf32>, i32 -> vector<8x256xf32>
    %58 = arith.mulf %55, %57 : vector<8x256xf32>
    %59 = arith.mulf %55, %42 : vector<8x256xf32>
    %c192_i32_33 = arith.constant 192 : i32
    %60 = tpu.dynamic_rotate %58 by %c192_i32_33 dim 1 : vector<8x256xf32>, i32 -> vector<8x256xf32>
    %61 = arith.addf %59, %60 : vector<8x256xf32>
    %62 = math.tanh %61 : vector<8x256xf32>
    %c192_i32_34 = arith.constant 192 : i32
    %63 = tpu.dynamic_rotate %62 by %c192_i32_34 dim 1 : vector<8x256xf32>, i32 -> vector<8x256xf32>
    %64 = arith.mulf %55, %63 : vector<8x256xf32>
    %65 = vector.extract_strided_slice %64 {offsets = [0, 0], sizes = [8, 64], strides = [1, 1]} : vector<8x256xf32> to vector<8x64xf32>
    %c24 = arith.constant 24 : index
    %c0_35 = arith.constant 0 : index
    %66 = vector.load %arg9[%c24, %c0_35] : memref<64x256xf32, #tpu.memory_space<vmem>>, vector<8x256xf32>
    %c0_36 = arith.constant 0 : index
    %c0_37 = arith.constant 0 : index
    %67 = vector.load %arg4[%c0_36, %c0_37] : memref<64x256xf32, #tpu.memory_space<vmem>>, vector<64x256xf32>
    %cst_38 = arith.constant dense<0.000000e+00> : vector<8x256xf32>
    %68 = tpu.matmul %65, %67, %cst_38 {dimension_numbers = #tpu.dot_dimension_numbers<[1], [0], [0], [1], [0, 0, 1, 1], [], []>} : vector<8x64xf32>, vector<64x256xf32>, vector<8x256xf32> -> vector<8x256xf32>
    %69 = arith.addf %66, %68 : vector<8x256xf32>
    %70 = arith.negf %69 : vector<8x256xf32>
    %71 = math.exp %70 : vector<8x256xf32>
    %cst_39 = arith.constant 1.000000e+00 : f32
    %72 = vector.broadcast %cst_39 : f32 to vector<8x256xf32>
    %73 = arith.addf %72, %71 : vector<8x256xf32>
    %74 = arith.divf %72, %73 : vector<8x256xf32>
    %75 = math.tanh %69 : vector<8x256xf32>
    %c192_i32_40 = arith.constant 192 : i32
    %76 = tpu.dynamic_rotate %75 by %c192_i32_40 dim 1 : vector<8x256xf32>, i32 -> vector<8x256xf32>
    %77 = arith.mulf %74, %76 : vector<8x256xf32>
    %78 = arith.mulf %74, %61 : vector<8x256xf32>
    %c192_i32_41 = arith.constant 192 : i32
    %79 = tpu.dynamic_rotate %77 by %c192_i32_41 dim 1 : vector<8x256xf32>, i32 -> vector<8x256xf32>
    %80 = arith.addf %78, %79 : vector<8x256xf32>
    %81 = math.tanh %80 : vector<8x256xf32>
    %c192_i32_42 = arith.constant 192 : i32
    %82 = tpu.dynamic_rotate %81 by %c192_i32_42 dim 1 : vector<8x256xf32>, i32 -> vector<8x256xf32>
    %83 = arith.mulf %74, %82 : vector<8x256xf32>
    %84 = vector.extract_strided_slice %83 {offsets = [0, 0], sizes = [8, 64], strides = [1, 1]} : vector<8x256xf32> to vector<8x64xf32>
    %c32 = arith.constant 32 : index
    %c0_43 = arith.constant 0 : index
    %85 = vector.load %arg9[%c32, %c0_43] : memref<64x256xf32, #tpu.memory_space<vmem>>, vector<8x256xf32>
    %c0_44 = arith.constant 0 : index
    %c0_45 = arith.constant 0 : index
    %86 = vector.load %arg4[%c0_44, %c0_45] : memref<64x256xf32, #tpu.memory_space<vmem>>, vector<64x256xf32>
    %cst_46 = arith.constant dense<0.000000e+00> : vector<8x256xf32>
    %87 = tpu.matmul %84, %86, %cst_46 {dimension_numbers = #tpu.dot_dimension_numbers<[1], [0], [0], [1], [0, 0, 1, 1], [], []>} : vector<8x64xf32>, vector<64x256xf32>, vector<8x256xf32> -> vector<8x256xf32>
    %88 = arith.addf %85, %87 : vector<8x256xf32>
    %89 = arith.negf %88 : vector<8x256xf32>
    %90 = math.exp %89 : vector<8x256xf32>
    %cst_47 = arith.constant 1.000000e+00 : f32
    %91 = vector.broadcast %cst_47 : f32 to vector<8x256xf32>
    %92 = arith.addf %91, %90 : vector<8x256xf32>
    %93 = arith.divf %91, %92 : vector<8x256xf32>
    %94 = math.tanh %88 : vector<8x256xf32>
    %c192_i32_48 = arith.constant 192 : i32
    %95 = tpu.dynamic_rotate %94 by %c192_i32_48 dim 1 : vector<8x256xf32>, i32 -> vector<8x256xf32>
    %96 = arith.mulf %93, %95 : vector<8x256xf32>
    %97 = arith.mulf %93, %80 : vector<8x256xf32>
    %c192_i32_49 = arith.constant 192 : i32
    %98 = tpu.dynamic_rotate %96 by %c192_i32_49 dim 1 : vector<8x256xf32>, i32 -> vector<8x256xf32>
    %99 = arith.addf %97, %98 : vector<8x256xf32>
    %100 = math.tanh %99 : vector<8x256xf32>
    %c192_i32_50 = arith.constant 192 : i32
    %101 = tpu.dynamic_rotate %100 by %c192_i32_50 dim 1 : vector<8x256xf32>, i32 -> vector<8x256xf32>
    %102 = arith.mulf %93, %101 : vector<8x256xf32>
    %103 = vector.extract_strided_slice %102 {offsets = [0, 0], sizes = [8, 64], strides = [1, 1]} : vector<8x256xf32> to vector<8x64xf32>
    %c40 = arith.constant 40 : index
    %c0_51 = arith.constant 0 : index
    %104 = vector.load %arg9[%c40, %c0_51] : memref<64x256xf32, #tpu.memory_space<vmem>>, vector<8x256xf32>
    %c0_52 = arith.constant 0 : index
    %c0_53 = arith.constant 0 : index
    %105 = vector.load %arg4[%c0_52, %c0_53] : memref<64x256xf32, #tpu.memory_space<vmem>>, vector<64x256xf32>
    %cst_54 = arith.constant dense<0.000000e+00> : vector<8x256xf32>
    %106 = tpu.matmul %103, %105, %cst_54 {dimension_numbers = #tpu.dot_dimension_numbers<[1], [0], [0], [1], [0, 0, 1, 1], [], []>} : vector<8x64xf32>, vector<64x256xf32>, vector<8x256xf32> -> vector<8x256xf32>
    %107 = arith.addf %104, %106 : vector<8x256xf32>
    %108 = arith.negf %107 : vector<8x256xf32>
    %109 = math.exp %108 : vector<8x256xf32>
    %cst_55 = arith.constant 1.000000e+00 : f32
    %110 = vector.broadcast %cst_55 : f32 to vector<8x256xf32>
    %111 = arith.addf %110, %109 : vector<8x256xf32>
    %112 = arith.divf %110, %111 : vector<8x256xf32>
    %113 = math.tanh %107 : vector<8x256xf32>
    %c192_i32_56 = arith.constant 192 : i32
    %114 = tpu.dynamic_rotate %113 by %c192_i32_56 dim 1 : vector<8x256xf32>, i32 -> vector<8x256xf32>
    %115 = arith.mulf %112, %114 : vector<8x256xf32>
    %116 = arith.mulf %112, %99 : vector<8x256xf32>
    %c192_i32_57 = arith.constant 192 : i32
    %117 = tpu.dynamic_rotate %115 by %c192_i32_57 dim 1 : vector<8x256xf32>, i32 -> vector<8x256xf32>
    %118 = arith.addf %116, %117 : vector<8x256xf32>
    %119 = math.tanh %118 : vector<8x256xf32>
    %c192_i32_58 = arith.constant 192 : i32
    %120 = tpu.dynamic_rotate %119 by %c192_i32_58 dim 1 : vector<8x256xf32>, i32 -> vector<8x256xf32>
    %121 = arith.mulf %112, %120 : vector<8x256xf32>
    %122 = vector.extract_strided_slice %121 {offsets = [0, 0], sizes = [8, 64], strides = [1, 1]} : vector<8x256xf32> to vector<8x64xf32>
    %c48 = arith.constant 48 : index
    %c0_59 = arith.constant 0 : index
    %123 = vector.load %arg9[%c48, %c0_59] : memref<64x256xf32, #tpu.memory_space<vmem>>, vector<8x256xf32>
    %c0_60 = arith.constant 0 : index
    %c0_61 = arith.constant 0 : index
    %124 = vector.load %arg4[%c0_60, %c0_61] : memref<64x256xf32, #tpu.memory_space<vmem>>, vector<64x256xf32>
    %cst_62 = arith.constant dense<0.000000e+00> : vector<8x256xf32>
    %125 = tpu.matmul %122, %124, %cst_62 {dimension_numbers = #tpu.dot_dimension_numbers<[1], [0], [0], [1], [0, 0, 1, 1], [], []>} : vector<8x64xf32>, vector<64x256xf32>, vector<8x256xf32> -> vector<8x256xf32>
    %126 = arith.addf %123, %125 : vector<8x256xf32>
    %127 = arith.negf %126 : vector<8x256xf32>
    %128 = math.exp %127 : vector<8x256xf32>
    %cst_63 = arith.constant 1.000000e+00 : f32
    %129 = vector.broadcast %cst_63 : f32 to vector<8x256xf32>
    %130 = arith.addf %129, %128 : vector<8x256xf32>
    %131 = arith.divf %129, %130 : vector<8x256xf32>
    %132 = math.tanh %126 : vector<8x256xf32>
    %c192_i32_64 = arith.constant 192 : i32
    %133 = tpu.dynamic_rotate %132 by %c192_i32_64 dim 1 : vector<8x256xf32>, i32 -> vector<8x256xf32>
    %134 = arith.mulf %131, %133 : vector<8x256xf32>
    %135 = arith.mulf %131, %118 : vector<8x256xf32>
    %c192_i32_65 = arith.constant 192 : i32
    %136 = tpu.dynamic_rotate %134 by %c192_i32_65 dim 1 : vector<8x256xf32>, i32 -> vector<8x256xf32>
    %137 = arith.addf %135, %136 : vector<8x256xf32>
    %138 = math.tanh %137 : vector<8x256xf32>
    %c192_i32_66 = arith.constant 192 : i32
    %139 = tpu.dynamic_rotate %138 by %c192_i32_66 dim 1 : vector<8x256xf32>, i32 -> vector<8x256xf32>
    %140 = arith.mulf %131, %139 : vector<8x256xf32>
    %141 = vector.extract_strided_slice %140 {offsets = [0, 0], sizes = [8, 64], strides = [1, 1]} : vector<8x256xf32> to vector<8x64xf32>
    %c56 = arith.constant 56 : index
    %c0_67 = arith.constant 0 : index
    %142 = vector.load %arg9[%c56, %c0_67] : memref<64x256xf32, #tpu.memory_space<vmem>>, vector<8x256xf32>
    %c0_68 = arith.constant 0 : index
    %c0_69 = arith.constant 0 : index
    %143 = vector.load %arg4[%c0_68, %c0_69] : memref<64x256xf32, #tpu.memory_space<vmem>>, vector<64x256xf32>
    %cst_70 = arith.constant dense<0.000000e+00> : vector<8x256xf32>
    %144 = tpu.matmul %141, %143, %cst_70 {dimension_numbers = #tpu.dot_dimension_numbers<[1], [0], [0], [1], [0, 0, 1, 1], [], []>} : vector<8x64xf32>, vector<64x256xf32>, vector<8x256xf32> -> vector<8x256xf32>
    %145 = arith.addf %142, %144 : vector<8x256xf32>
    %146 = arith.negf %145 : vector<8x256xf32>
    %147 = math.exp %146 : vector<8x256xf32>
    %cst_71 = arith.constant 1.000000e+00 : f32
    %148 = vector.broadcast %cst_71 : f32 to vector<8x256xf32>
    %149 = arith.addf %148, %147 : vector<8x256xf32>
    %150 = arith.divf %148, %149 : vector<8x256xf32>
    %151 = math.tanh %145 : vector<8x256xf32>
    %c192_i32_72 = arith.constant 192 : i32
    %152 = tpu.dynamic_rotate %151 by %c192_i32_72 dim 1 : vector<8x256xf32>, i32 -> vector<8x256xf32>
    %153 = arith.mulf %150, %152 : vector<8x256xf32>
    %154 = arith.mulf %150, %137 : vector<8x256xf32>
    %c192_i32_73 = arith.constant 192 : i32
    %155 = tpu.dynamic_rotate %153 by %c192_i32_73 dim 1 : vector<8x256xf32>, i32 -> vector<8x256xf32>
    %156 = arith.addf %154, %155 : vector<8x256xf32>
    %157 = math.tanh %156 : vector<8x256xf32>
    %c192_i32_74 = arith.constant 192 : i32
    %158 = tpu.dynamic_rotate %157 by %c192_i32_74 dim 1 : vector<8x256xf32>, i32 -> vector<8x256xf32>
    %159 = arith.mulf %150, %158 : vector<8x256xf32>
    %160 = vector.extract_strided_slice %159 {offsets = [0, 0], sizes = [8, 64], strides = [1, 1]} : vector<8x256xf32> to vector<8x64xf32>
    %c0_75 = arith.constant 0 : index
    %c0_76 = arith.constant 0 : index
    %161 = vector.load %arg6[%c0_75, %c0_76] : memref<64x16xf32, #tpu.memory_space<vmem>>, vector<64x16xf32>
    %cst_77 = arith.constant dense<0.000000e+00> : vector<8x16xf32>
    %162 = tpu.matmul %160, %161, %cst_77 {dimension_numbers = #tpu.dot_dimension_numbers<[1], [0], [0], [1], [0, 0, 1, 1], [], []>} : vector<8x64xf32>, vector<64x16xf32>, vector<8x16xf32> -> vector<8x16xf32>
    %c0_78 = arith.constant 0 : index
    %c0_79 = arith.constant 0 : index
    %163 = vector.load %arg7[%c0_78, %c0_79] : memref<1x16xf32, #tpu.memory_space<vmem>>, vector<1x16xf32>
    %164 = vector.broadcast %163 : vector<1x16xf32> to vector<8x16xf32>
    %165 = arith.addf %162, %164 : vector<8x16xf32>
    %cst_80 = arith.constant dense<0xFF800000> : vector<8xf32>
    %166 = vector.multi_reduction <maximumf>, %165, %cst_80 [1] : vector<8x16xf32> to vector<8xf32>
    %167 = vector.shape_cast %166 : vector<8xf32> to vector<8x1xf32>
    %168 = vector.broadcast %167 : vector<8x1xf32> to vector<8x16xf32>
    %169 = arith.subf %165, %168 : vector<8x16xf32>
    %170 = math.exp %169 : vector<8x16xf32>
    %cst_81 = arith.constant dense<0.000000e+00> : vector<8xf32>
    %171 = vector.multi_reduction <add>, %170, %cst_81 [1] : vector<8x16xf32> to vector<8xf32>
    %172 = vector.shape_cast %171 : vector<8xf32> to vector<8x1xf32>
    %173 = math.log %172 : vector<8x1xf32>
    %174 = vector.broadcast %173 : vector<8x1xf32> to vector<8x16xf32>
    %175 = arith.subf %169, %174 : vector<8x16xf32>
    %c0_82 = arith.constant 0 : index
    %c0_83 = arith.constant 0 : index
    %176 = vector.load %arg8[%c0_82, %c0_83] : memref<8x16xf32, #tpu.memory_space<vmem>>, vector<8x16xf32>
    tpu.vector_store %arg8[%c0_82, %c0_83], %175 {strides = array<i32>} : memref<8x16xf32, #tpu.memory_space<vmem>>, vector<8x16xf32>,
    return
  }
}

</mosaic_0001>

<llo_original>
// kernel: tpu_custom_call.1
$region0: #{tpu_custom_call.1}
  #allocation0 [shape = 'u32[]', space=smem, size = 0x4, offset = 0x4, fixed_abs, tag = 'smem constant byte address 0x4 - core index']
  #allocation1 [shape = 'u32[144,128]{1,0:T(1,128)}', space=vmem, size = 0x12000, scoped, tag = 'internal scratch']
  #allocation2 [shape = 'f32[64,256]{1,0:T(8,128)}', space=vmem, size = 0x10000, scoped, tag = 'scratch operand']
  %s0 = inlined_call_operand.vmem [shape: f32[64,32], index: 0, kind: input, shape index: {}]
  %s1 = inlined_call_operand.vmem [shape: f32[8,64], index: 1, kind: input, shape index: {}]
  %s2 = inlined_call_operand.vmem [shape: f32[8,256], index: 2, kind: input, shape index: {}]
  %s3 = inlined_call_operand.hbm [shape: f32[32,256], index: 3, kind: input, shape index: {}]
  %s4 = inlined_call_operand.vmem [shape: f32[64,256], index: 4, kind: input, shape index: {}]
  %s5 = inlined_call_operand.vmem [shape: f32[1,256], index: 5, kind: input, shape index: {}]
  %s6 = inlined_call_operand.vmem [shape: f32[64,16], index: 6, kind: input, shape index: {}]
  %s7 = inlined_call_operand.vmem [shape: f32[1,16], index: 7, kind: input, shape index: {}]
  %s8 = inlined_call_operand.hbm [shape: f32[8,16], index: 8, kind: output, shape index: {}]
  %s9 = sld [smem:[#allocation0]]
  $region46: #{tpu_custom_call.1} parent=0
    _
  %s11 = ssub.s32 1, %s9
  %s12 = scalar_select 0, %s11, %s9
  $region1: #{tpu_custom_call.1} parent=0
    #allocation3 [shape = 'u8[32768]{0}', space=vmem, size = 0x8000, scoped, tag = 'input window, operand 3, single buffered']
    #allocation4 [shape = 's32[1]{0}', space=sflag, size = 0x4, scoped, tag = 'scoped memory for tpu_custom_call.1']
    #allocation5 [shape = 's32[1]{0}', space=sflag, size = 0x4, scoped, tag = 'scoped memory for tpu_custom_call.1']
    #allocation6 [shape = 'u8[4096]{0}', space=vmem, size = 0x1000, scoped, tag = 'output window, operand 0, single buffered']
    %13 = vsyncpa [#allocation4], 0
    %14 = vsyncpa [#allocation5], 0
    // Predicated region
    $region2: #{tpu_custom_call.1} parent=1 // pred_check
      _
    $region3: #{tpu_custom_call.1} parent=1 // pred_check_branch
      %16 = sbr.rel (0) target = $region5
    $region4: #{tpu_custom_call.1} parent=1 // pred_region
      _
    $region5: #{tpu_custom_call.1} parent=1 // pred_fallthru
      _
    // Predicated region
    $region6: #{tpu_custom_call.1} parent=1 // pred_check
      _
    $region7: #{tpu_custom_call.1} parent=1 // pred_check_branch
      %18 = sbr.rel (0) target = $region9
    $region8: #{tpu_custom_call.1} parent=1 // pred_region
      _
    $region9: #{tpu_custom_call.1} parent=1 // pred_fallthru
      _
    // Predicated region
    $region10: #{tpu_custom_call.1} parent=1 // pred_check
      _
    $region11: #{tpu_custom_call.1} parent=1 // pred_check_branch
      %20 = sbr.rel (0) target = $region13
    $region12: #{tpu_custom_call.1} parent=1 // pred_region
      _
    $region13: #{tpu_custom_call.1} parent=1 // pred_fallthru
      _
    // Predicated region
    $region14: #{tpu_custom_call.1} parent=1 // pred_check
      _
    $region15: #{tpu_custom_call.1} parent=1 // pred_check_branch
      %22 = sbr.rel (0) target = $region17
    $region16: #{tpu_custom_call.1} parent=1 // pred_region
      %s24 = ssub.s32 1024, 1024
      %25 = vsyncadd [#allocation4], %s24
      %s26 = sshll.u32 [#allocation3], 4
      %s27 = int_to_ptr.vmem [resolvable:$true] %s26
      %32 = dma.hbm_to_vmem [thread:$0]  %s3, 1024, %s27, [#allocation4], 256, 256, 16
    $region17: #{tpu_custom_call.1} parent=1 // pred_fallthru
      _
    // Predicated region
    $region18: #{tpu_custom_call.1} parent=1 // pred_check
      _
    $region19: #{tpu_custom_call.1} parent=1 // pred_check_branch
      %34 = sbr.rel (0) target = $region21
    $region20: #{tpu_custom_call.1} parent=1 // pred_region
      _
    $region21: #{tpu_custom_call.1} parent=1 // pred_fallthru
      _
    // Predicated region
    $region22: #{tpu_custom_call.1} parent=1 // pred_check
      _
    $region23: #{tpu_custom_call.1} parent=1 // pred_check_branch
      %36 = sbr.rel (0) target = $region25
    $region24: #{tpu_custom_call.1} parent=1 // pred_region
      _
    $region25: #{tpu_custom_call.1} parent=1 // pred_fallthru
      _
    // Predicated region
    $region26: #{tpu_custom_call.1} parent=1 // pred_check
      _
    $region27: #{tpu_custom_call.1} parent=1 // pred_check_branch
      %38 = sbr.rel (0) target = $region29
    $region28: #{tpu_custom_call.1} parent=1 // pred_region
      _
    $region29: #{tpu_custom_call.1} parent=1 // pred_fallthru
      _
    // Predicated region
    $region30: #{tpu_custom_call.1} parent=1 // pred_check
      _
    $region31: #{tpu_custom_call.1} parent=1 // pred_check_branch
      %40 = sbr.rel (0) target = $region33
    $region32: #{tpu_custom_call.1} parent=1 // pred_region
      _
    $region33: #{tpu_custom_call.1} parent=1 // pred_fallthru
      _
    // Predicated region
    $region34: #{tpu_custom_call.1} parent=1 // pred_check
      _
    $region35: #{tpu_custom_call.1} parent=1 // pred_check_branch
      %42 = sbr.rel (0) target = $region37
    $region36: #{tpu_custom_call.1} parent=1 // pred_region
      %43 = dma.done [#allocation4], 1024
    $region37: #{tpu_custom_call.1} parent=1 // pred_fallthru
      _
    %v44 = vld [vmem:[%s0] sm:$0xff]
    %v45 = vld [vmem:[%s0 + $0x8] sm:$0xff]
    %v46 = vld [vmem:[%s0 + $0x10] sm:$0xff]
    %v47 = vld [vmem:[%s0 + $0x18] sm:$0xff]
    %v48 = vld [vmem:[%s0 + $0x20] sm:$0xff]
    %v49 = vld [vmem:[%s0 + $0x28] sm:$0xff]
    %v50 = vld [vmem:[%s0 + $0x30] sm:$0xff]
    %v51 = vld [vmem:[%s0 + $0x38] sm:$0xff]
    %v52 = vld [vmem:[#allocation3] sm:$0xff]
    %v53 = vld [vmem:[#allocation3 + $0x8] sm:$0xff]
    %v54 = vld [vmem:[#allocation3 + $0x10] sm:$0xff]
    %v55 = vld [vmem:[#allocation3 + $0x18] sm:$0xff]
    %v56 = vld [vmem:[#allocation3 + $0x20] sm:$0xff]
    %v57 = vld [vmem:[#allocation3 + $0x28] sm:$0xff]
    %v58 = vld [vmem:[#allocation3 + $0x30] sm:$0xff]
    %v59 = vld [vmem:[#allocation3 + $0x38] sm:$0xff]
    %v60 = vld [vmem:[%s5] sm:$0x3]
    %v62 = vlaneseq
    %v63 = vshrl.u32 %v62, 7
    %v64 = vsub.s32 0, %v63
    %v65 = vrot.slane %v60, %v64
    %v66 = vlaneseq
    %v67 = vshrl.u32 %v66, 7
    %v68 = vsub.s32 1, %v67
    %v69 = vrot.slane %v60, %v68
    %vm72 = vcmask 261120
    %v74 = vsel %vm72, %v44, 0
    %v77 = vsel %vm72, %v45, 0
    %v80 = vsel %vm72, %v46, 0
    %v83 = vsel %vm72, %v47, 0
    %v86 = vsel %vm72, %v48, 0
    %v89 = vsel %vm72, %v49, 0
    %v92 = vsel %vm72, %v50, 0
    %v95 = vsel %vm72, %v51, 0
    %97 = vmatprep.subr.mxu0 %v53
    %98 = vmatpush1.msra.mxu0 %v52
    %99 = vmatprep.subr.mxu0 %v55
    %100 = vmatpush1.msra.mxu0 %v54
    %101 = vmatprep.subr.mxu0 %v57
    %102 = vmatpush1.msra.mxu0 %v56
    %103 = vmatprep.subr.mxu0 %v59
    %104 = vmatpush1.msra.mxu0 %v58
    %105 = vmatprep.subr.mxu0 0.0
    %106 = vmatpush1.msra.mxu0 0.0
    %107 = vmatprep.subr.mxu0 0.0
    %108 = vmatpush1.msra.mxu0 0.0
    %109 = vmatprep.subr.mxu0 0.0
    %110 = vmatpush1.msra.mxu0 0.0
    %111 = vmatprep.subr.mxu0 0.0
    %112 = vmatpush1.msra.mxu0 0.0
    %113 = vmatprep.subr.mxu0 0.0
    %114 = vmatpush1.msra.mxu0 0.0
    %115 = vmatprep.subr.mxu0 0.0
    %116 = vmatpush1.msra.mxu0 0.0
    %117 = vmatprep.subr.mxu0 0.0
    %118 = vmatpush1.msra.mxu0 0.0
    %119 = vmatprep.subr.mxu0 0.0
    %120 = vmatpush1.msra.mxu0 0.0
    %121 = vmatprep.subr.mxu0 0.0
    %122 = vmatpush1.msra.mxu0 0.0
    %123 = vmatprep.subr.mxu0 0.0
    %124 = vmatpush1.msra.mxu0 0.0
    %125 = vmatprep.subr.mxu0 0.0
    %126 = vmatpush1.msra.mxu0 0.0
    %127 = vmatprep.subr.mxu0 0.0
    %128 = vmatpush1.msra.mxu0 0.0
    %129 = vmatprep.subr.mxu0 0.0
    %130 = vmatpush1.msra.mxu0 0.0
    %131 = vmatprep.subr.mxu0 0.0
    %132 = vmatpush1.msra.mxu0 0.0
    %133 = vmatprep.subr.mxu0 0.0
    %134 = vmatpush1.msra.mxu0 0.0
    %135 = vmatprep.subr.mxu0 0.0
    %136 = vmatpush1.msra.mxu0 0.0
    %137 = vmatprep.subr.mxu0 0.0
    %138 = vmatpush1.msra.mxu0 0.0
    %139 = vmatprep.subr.mxu0 0.0
    %140 = vmatpush1.msra.mxu0 0.0
    %141 = vmatprep.subr.mxu0 0.0
    %142 = vmatpush1.msra.mxu0 0.0
    %143 = vmatprep.subr.mxu0 0.0
    %144 = vmatpush1.msra.mxu0 0.0
    %145 = vmatprep.subr.mxu0 0.0
    %146 = vmatpush1.msra.mxu0 0.0
    %147 = vmatprep.subr.mxu0 0.0
    %148 = vmatpush1.msra.mxu0 0.0
    %149 = vmatprep.subr.mxu0 0.0
    %150 = vmatpush1.msra.mxu0 0.0
    %151 = vmatprep.subr.mxu0 0.0
    %152 = vmatpush1.msra.mxu0 0.0
    %153 = vmatprep.subr.mxu0 0.0
    %154 = vmatpush1.msra.mxu0 0.0
    %155 = vmatprep.subr.mxu0 0.0
    %156 = vmatpush1.msra.mxu0 0.0
    %157 = vmatprep.subr.mxu0 0.0
    %158 = vmatpush1.msra.mxu0 0.0
    %159 = vmatprep.subr.mxu0 0.0
    %160 = vmatpush1.msra.mxu0 0.0
    %161 = vmatprep.mubr.f32.mxu0 0.0
    %162 = vmatmul.mubr.f32.gmra.mrb[0].mxu0 %v74
    %v163 = vpop.f32.mrb[0].mxu0
    %v164 = vadd.f32 %v65, %v163
    %v165 = vpop.f32.mrb[0].mxu0
    %v166 = vadd.f32 %v69, %v165
    %167 = vmatprep.mubr.f32.mxu0 0.0
    %168 = vmatmul.mubr.f32.gmra.mrb[0].mxu0 %v77
    %v169 = vpop.f32.mrb[0].mxu0
    %v170 = vadd.f32 %v65, %v169
    %v171 = vpop.f32.mrb[0].mxu0
    %v172 = vadd.f32 %v69, %v171
    %173 = vmatprep.mubr.f32.mxu0 0.0
    %174 = vmatmul.mubr.f32.gmra.mrb[0].mxu0 %v80
    %v175 = vpop.f32.mrb[0].mxu0
    %v176 = vadd.f32 %v65, %v175
    %v177 = vpop.f32.mrb[0].mxu0
    %v178 = vadd.f32 %v69, %v177
    %179 = vmatprep.mubr.f32.mxu0 0.0
    %180 = vmatmul.mubr.f32.gmra.mrb[0].mxu0 %v83
    %v181 = vpop.f32.mrb[0].mxu0
    %v182 = vadd.f32 %v65, %v181
    %v183 = vpop.f32.mrb[0].mxu0
    %v184 = vadd.f32 %v69, %v183
    %185 = vmatprep.mubr.f32.mxu0 0.0
    %186 = vmatmul.mubr.f32.gmra.mrb[0].mxu0 %v86
    %v187 = vpop.f32.mrb[0].mxu0
    %v188 = vadd.f32 %v65, %v187
    %v189 = vpop.f32.mrb[0].mxu0
    %v190 = vadd.f32 %v69, %v189
    %191 = vmatprep.mubr.f32.mxu0 0.0
    %192 = vmatmul.mubr.f32.gmra.mrb[0].mxu0 %v89
    %v193 = vpop.f32.mrb[0].mxu0
    %v194 = vadd.f32 %v65, %v193
    %v195 = vpop.f32.mrb[0].mxu0
    %v196 = vadd.f32 %v69, %v195
    %197 = vmatprep.mubr.f32.mxu0 0.0
    %198 = vmatmul.mubr.f32.gmra.mrb[0].mxu0 %v92
    %v199 = vpop.f32.mrb[0].mxu0
    %v200 = vadd.f32 %v65, %v199
    %v201 = vpop.f32.mrb[0].mxu0
    %v202 = vadd.f32 %v69, %v201
    %203 = vmatprep.mubr.f32.mxu0 0.0
    %204 = vmatmul.mubr.f32.gmra.mrb[0].mxu0 %v95
    %v205 = vpop.f32.mrb[0].mxu0
    %v206 = vadd.f32 %v65, %v205
    %v207 = vpop.f32.mrb[0].mxu0
    %v208 = vadd.f32 %v69, %v207
    %209 = vdwg.mxu0
    %210 = vst [vmem:[#allocation2] sm:$0xff] %v164
    %211 = vst [vmem:[#allocation2 + $0x8] sm:$0xff] %v166
    %212 = vst [vmem:[#allocation2 + $0x10] sm:$0xff] %v170
    %213 = vst [vmem:[#allocation2 + $0x18] sm:$0xff] %v172
    %214 = vst [vmem:[#allocation2 + $0x20] sm:$0xff] %v176
    %215 = vst [vmem:[#allocation2 + $0x28] sm:$0xff] %v178
    %216 = vst [vmem:[#allocation2 + $0x30] sm:$0xff] %v182
    %217 = vst [vmem:[#allocation2 + $0x38] sm:$0xff] %v184
    %218 = vst [vmem:[#allocation2 + $0x40] sm:$0xff] %v188
    %219 = vst [vmem:[#allocation2 + $0x48] sm:$0xff] %v190
    %220 = vst [vmem:[#allocation2 + $0x50] sm:$0xff] %v194
    %221 = vst [vmem:[#allocation2 + $0x58] sm:$0xff] %v196
    %222 = vst [vmem:[#allocation2 + $0x60] sm:$0xff] %v200
    %223 = vst [vmem:[#allocation2 + $0x68] sm:$0xff] %v202
    %224 = vst [vmem:[#allocation2 + $0x70] sm:$0xff] %v206
    %225 = vst [vmem:[#allocation2 + $0x78] sm:$0xff] %v208
    %v226 = vld [vmem:[%s1] sm:$0xff]
    %v227 = vld [vmem:[%s2] sm:$0xff]
    %v228 = vld [vmem:[%s2 + $0x8] sm:$0xff]
    %v229 = vld [vmem:[#allocation2] sm:$0xff]
    %v230 = vld [vmem:[#allocation2 + $0x8] sm:$0xff]
    %v231 = vld [vmem:[%s4] sm:$0xff]
    %v232 = vld [vmem:[%s4 + $0x8] sm:$0xff]
    %v233 = vld [vmem:[%s4 + $0x10] sm:$0xff]
    %v234 = vld [vmem:[%s4 + $0x18] sm:$0xff]
    %v235 = vld [vmem:[%s4 + $0x20] sm:$0xff]
    %v236 = vld [vmem:[%s4 + $0x28] sm:$0xff]
    %v237 = vld [vmem:[%s4 + $0x30] sm:$0xff]
    %v238 = vld [vmem:[%s4 + $0x38] sm:$0xff]
    %v239 = vld [vmem:[%s4 + $0x40] sm:$0xff]
    %v240 = vld [vmem:[%s4 + $0x48] sm:$0xff]
    %v241 = vld [vmem:[%s4 + $0x50] sm:$0xff]
    %v242 = vld [vmem:[%s4 + $0x58] sm:$0xff]
    %v243 = vld [vmem:[%s4 + $0x60] sm:$0xff]
    %v244 = vld [vmem:[%s4 + $0x68] sm:$0xff]
    %v245 = vld [vmem:[%s4 + $0x70] sm:$0xff]
    %v246 = vld [vmem:[%s4 + $0x78] sm:$0xff]
    %vm247 = vcmask 523264
    %v249 = vsel %vm247, %v226, 0
    %251 = vmatprep.subr.mxu0 %v232
    %252 = vmatpush1.msra.mxu0 %v231
    %253 = vmatprep.subr.mxu0 %v234
    %254 = vmatpush1.msra.mxu0 %v233
    %255 = vmatprep.subr.mxu0 %v236
    %256 = vmatpush1.msra.mxu0 %v235
    %257 = vmatprep.subr.mxu0 %v238
    %258 = vmatpush1.msra.mxu0 %v237
    %259 = vmatprep.subr.mxu0 %v240
    %260 = vmatpush1.msra.mxu0 %v239
    %261 = vmatprep.subr.mxu0 %v242
    %262 = vmatpush1.msra.mxu0 %v241
    %263 = vmatprep.subr.mxu0 %v244
    %264 = vmatpush1.msra.mxu0 %v243
    %265 = vmatprep.subr.mxu0 %v246
    %266 = vmatpush1.msra.mxu0 %v245
    %267 = vmatprep.subr.mxu0 0.0
    %268 = vmatpush1.msra.mxu0 0.0
    %269 = vmatprep.subr.mxu0 0.0
    %270 = vmatpush1.msra.mxu0 0.0
    %271 = vmatprep.subr.mxu0 0.0
    %272 = vmatpush1.msra.mxu0 0.0
    %273 = vmatprep.subr.mxu0 0.0
    %274 = vmatpush1.msra.mxu0 0.0
    %275 = vmatprep.subr.mxu0 0.0
    %276 = vmatpush1.msra.mxu0 0.0
    %277 = vmatprep.subr.mxu0 0.0
    %278 = vmatpush1.msra.mxu0 0.0
    %279 = vmatprep.subr.mxu0 0.0
    %280 = vmatpush1.msra.mxu0 0.0
    %281 = vmatprep.subr.mxu0 0.0
    %282 = vmatpush1.msra.mxu0 0.0
    %283 = vmatprep.subr.mxu0 0.0
    %284 = vmatpush1.msra.mxu0 0.0
    %285 = vmatprep.subr.mxu0 0.0
    %286 = vmatpush1.msra.mxu0 0.0
    %287 = vmatprep.subr.mxu0 0.0
    %288 = vmatpush1.msra.mxu0 0.0
    %289 = vmatprep.subr.mxu0 0.0
    %290 = vmatpush1.msra.mxu0 0.0
    %291 = vmatprep.subr.mxu0 0.0
    %292 = vmatpush1.msra.mxu0 0.0
    %293 = vmatprep.subr.mxu0 0.0
    %294 = vmatpush1.msra.mxu0 0.0
    %295 = vmatprep.subr.mxu0 0.0
    %296 = vmatpush1.msra.mxu0 0.0
    %297 = vmatprep.subr.mxu0 0.0
    %298 = vmatpush1.msra.mxu0 0.0
    %299 = vmatprep.subr.mxu0 0.0
    %300 = vmatpush1.msra.mxu0 0.0
    %301 = vmatprep.subr.mxu0 0.0
    %302 = vmatpush1.msra.mxu0 0.0
    %303 = vmatprep.subr.mxu0 0.0
    %304 = vmatpush1.msra.mxu0 0.0
    %305 = vmatprep.subr.mxu0 0.0
    %306 = vmatpush1.msra.mxu0 0.0
    %307 = vmatprep.subr.mxu0 0.0
    %308 = vmatpush1.msra.mxu0 0.0
    %309 = vmatprep.subr.mxu0 0.0
    %310 = vmatpush1.msra.mxu0 0.0
    %311 = vmatprep.subr.mxu0 0.0
    %312 = vmatpush1.msra.mxu0 0.0
    %313 = vmatprep.subr.mxu0 0.0
    %314 = vmatpush1.msra.mxu0 0.0
    %315 = vmatprep.mubr.f32.mxu0 0.0
    %316 = vmatmul.mubr.f32.gmra.mrb[0].mxu0 %v249
    %v317 = vpop.f32.mrb[0].mxu0
    %v318 = vadd.f32 0.0, %v317
    %v319 = vpop.f32.mrb[0].mxu0
    %v320 = vadd.f32 0.0, %v319
    %321 = vdwg.mxu0
    %v322 = vadd.f32 %v229, %v318
    %v323 = vadd.f32 %v230, %v320
    %v324 = vxor.u32 %v322, 2147483648
    %v325 = vxor.u32 %v323, 2147483648
    %v326 = vmul.f32 %v324, 1.442695
    %v327 = vpow.pop %v326
    %v328 = vmul.f32 %v325, 1.442695
    %v329 = vpow.pop %v328
    %v330 = vadd.f32 %v327, 1.0
    %v331 = vadd.f32 %v329, 1.0
    %v332 = vrcp.pop %v330
    %v333 = vmul.f32 1.0, %v332
    %v334 = vrcp.pop %v331
    %v335 = vmul.f32 1.0, %v334
    %v336 = vtanh.pop %v322
    %v337 = vtanh.pop %v323
    %338 = vrot.lane.b32.xlu0 %v336, 64
    %v339 = vpop.permute.xlu0 %338
    %340 = vrot.lane.b32.xlu0 %v337, 64
    %v341 = vpop.permute.xlu0 %340
    %v342 = vlaneseq
    %v343 = vand.u32 %v342, 127
    %vm344 = vcmp.lt.s32.totalorder %v343, 64
    %v345 = vsel %vm344, %v339, %v341
    %v346 = vsel %vm344, %v341, %v339
    %v347 = vmul.f32 %v333, %v345
    %v348 = vmul.f32 %v335, %v346
    %v349 = vmul.f32 %v333, %v227
    %v350 = vmul.f32 %v335, %v228
    %351 = vrot.lane.b32.xlu0 %v347, 64
    %v352 = vpop.permute.xlu0 %351
    %353 = vrot.lane.b32.xlu0 %v348, 64
    %v354 = vpop.permute.xlu0 %353
    %v355 = vsel %vm344, %v352, %v354
    %v356 = vsel %vm344, %v354, %v352
    %v357 = vadd.f32 %v349, %v355
    %v358 = vadd.f32 %v350, %v356
    %v359 = vtanh.pop %v357
    %v360 = vtanh.pop %v358
    %361 = vrot.lane.b32.xlu0 %v359, 64
    %v362 = vpop.permute.xlu0 %361
    %363 = vrot.lane.b32.xlu0 %v360, 64
    %v364 = vpop.permute.xlu0 %363
    %v365 = vsel %vm344, %v362, %v364
    %v366 = vmul.f32 %v333, %v365
    %v367 = vld [vmem:[#allocation2 + $0x10] sm:$0xff]
    %v368 = vld [vmem:[#allocation2 + $0x18] sm:$0xff]
    %v370 = vsel %vm247, %v366, 0
    %372 = vmatprep.subr.mxu0 %v232
    %373 = vmatpush1.msra.mxu0 %v231
    %374 = vmatprep.subr.mxu0 %v234
    %375 = vmatpush1.msra.mxu0 %v233
    %376 = vmatprep.subr.mxu0 %v236
    %377 = vmatpush1.msra.mxu0 %v235
    %378 = vmatprep.subr.mxu0 %v238
    %379 = vmatpush1.msra.mxu0 %v237
    %380 = vmatprep.subr.mxu0 %v240
    %381 = vmatpush1.msra.mxu0 %v239
    %382 = vmatprep.subr.mxu0 %v242
    %383 = vmatpush1.msra.mxu0 %v241
    %384 = vmatprep.subr.mxu0 %v244
    %385 = vmatpush1.msra.mxu0 %v243
    %386 = vmatprep.subr.mxu0 %v246
    %387 = vmatpush1.msra.mxu0 %v245
    %388 = vmatprep.subr.mxu0 0.0
    %389 = vmatpush1.msra.mxu0 0.0
    %390 = vmatprep.subr.mxu0 0.0
    %391 = vmatpush1.msra.mxu0 0.0
    %392 = vmatprep.subr.mxu0 0.0
    %393 = vmatpush1.msra.mxu0 0.0
    %394 = vmatprep.subr.mxu0 0.0
    %395 = vmatpush1.msra.mxu0 0.0
    %396 = vmatprep.subr.mxu0 0.0
    %397 = vmatpush1.msra.mxu0 0.0
    %398 = vmatprep.subr.mxu0 0.0
    %399 = vmatpush1.msra.mxu0 0.0
    %400 = vmatprep.subr.mxu0 0.0
    %401 = vmatpush1.msra.mxu0 0.0
    %402 = vmatprep.subr.mxu0 0.0
    %403 = vmatpush1.msra.mxu0 0.0
    %404 = vmatprep.subr.mxu0 0.0
    %405 = vmatpush1.msra.mxu0 0.0
    %406 = vmatprep.subr.mxu0 0.0
    %407 = vmatpush1.msra.mxu0 0.0
    %408 = vmatprep.subr.mxu0 0.0
    %409 = vmatpush1.msra.mxu0 0.0
    %410 = vmatprep.subr.mxu0 0.0
    %411 = vmatpush1.msra.mxu0 0.0
    %412 = vmatprep.subr.mxu0 0.0
    %413 = vmatpush1.msra.mxu0 0.0
    %414 = vmatprep.subr.mxu0 0.0
    %415 = vmatpush1.msra.mxu0 0.0
    %416 = vmatprep.subr.mxu0 0.0
    %417 = vmatpush1.msra.mxu0 0.0
    %418 = vmatprep.subr.mxu0 0.0
    %419 = vmatpush1.msra.mxu0 0.0
    %420 = vmatprep.subr.mxu0 0.0
    %421 = vmatpush1.msra.mxu0 0.0
    %422 = vmatprep.subr.mxu0 0.0
    %423 = vmatpush1.msra.mxu0 0.0
    %424 = vmatprep.subr.mxu0 0.0
    %425 = vmatpush1.msra.mxu0 0.0
    %426 = vmatprep.subr.mxu0 0.0
    %427 = vmatpush1.msra.mxu0 0.0
    %428 = vmatprep.subr.mxu0 0.0
    %429 = vmatpush1.msra.mxu0 0.0
    %430 = vmatprep.subr.mxu0 0.0
    %431 = vmatpush1.msra.mxu0 0.0
    %432 = vmatprep.subr.mxu0 0.0
    %433 = vmatpush1.msra.mxu0 0.0
    %434 = vmatprep.subr.mxu0 0.0
    %435 = vmatpush1.msra.mxu0 0.0
    %436 = vmatprep.mubr.f32.mxu0 0.0
    %437 = vmatmul.mubr.f32.gmra.mrb[0].mxu0 %v370
    %v438 = vpop.f32.mrb[0].mxu0
    %v439 = vadd.f32 0.0, %v438
    %v440 = vpop.f32.mrb[0].mxu0
    %v441 = vadd.f32 0.0, %v440
    %442 = vdwg.mxu0
    %v443 = vadd.f32 %v367, %v439
    %v444 = vadd.f32 %v368, %v441
    %v445 = vxor.u32 %v443, 2147483648
    %v446 = vxor.u32 %v444, 2147483648
    %v447 = vmul.f32 %v445, 1.442695
    %v448 = vpow.pop %v447
    %v449 = vmul.f32 %v446, 1.442695
    %v450 = vpow.pop %v449
    %v451 = vadd.f32 %v448, 1.0
    %v452 = vadd.f32 %v450, 1.0
    %v453 = vrcp.pop %v451
    %v454 = vmul.f32 1.0, %v453
    %v455 = vrcp.pop %v452
    %v456 = vmul.f32 1.0, %v455
    %v457 = vtanh.pop %v443
    %v458 = vtanh.pop %v444
    %459 = vrot.lane.b32.xlu0 %v457, 64
    %v460 = vpop.permute.xlu0 %459
    %461 = vrot.lane.b32.xlu0 %v458, 64
    %v462 = vpop.permute.xlu0 %461
    %v463 = vsel %vm344, %v460, %v462
    %v464 = vsel %vm344, %v462, %v460
    %v465 = vmul.f32 %v454, %v463
    %v466 = vmul.f32 %v456, %v464
    %v467 = vmul.f32 %v454, %v357
    %v468 = vmul.f32 %v456, %v358
    %469 = vrot.lane.b32.xlu0 %v465, 64
    %v470 = vpop.permute.xlu0 %469
    %471 = vrot.lane.b32.xlu0 %v466, 64
    %v472 = vpop.permute.xlu0 %471
    %v473 = vsel %vm344, %v470, %v472
    %v474 = vsel %vm344, %v472, %v470
    %v475 = vadd.f32 %v467, %v473
    %v476 = vadd.f32 %v468, %v474
    %v477 = vtanh.pop %v475
    %v478 = vtanh.pop %v476
    %479 = vrot.lane.b32.xlu0 %v477, 64
    %v480 = vpop.permute.xlu0 %479
    %481 = vrot.lane.b32.xlu0 %v478, 64
    %v482 = vpop.permute.xlu0 %481
    %v483 = vsel %vm344, %v480, %v482
    %v484 = vmul.f32 %v454, %v483
    %v485 = vld [vmem:[#allocation2 + $0x20] sm:$0xff]
    %v486 = vld [vmem:[#allocation2 + $0x28] sm:$0xff]
    %v488 = vsel %vm247, %v484, 0
    %490 = vmatprep.subr.mxu0 %v232
    %491 = vmatpush1.msra.mxu0 %v231
    %492 = vmatprep.subr.mxu0 %v234
    %493 = vmatpush1.msra.mxu0 %v233
    %494 = vmatprep.subr.mxu0 %v236
    %495 = vmatpush1.msra.mxu0 %v235
    %496 = vmatprep.subr.mxu0 %v238
    %497 = vmatpush1.msra.mxu0 %v237
    %498 = vmatprep.subr.mxu0 %v240
    %499 = vmatpush1.msra.mxu0 %v239
    %500 = vmatprep.subr.mxu0 %v242
    %501 = vmatpush1.msra.mxu0 %v241
    %502 = vmatprep.subr.mxu0 %v244
    %503 = vmatpush1.msra.mxu0 %v243
    %504 = vmatprep.subr.mxu0 %v246
    %505 = vmatpush1.msra.mxu0 %v245
    %506 = vmatprep.subr.mxu0 0.0
    %507 = vmatpush1.msra.mxu0 0.0
    %508 = vmatprep.subr.mxu0 0.0
    %509 = vmatpush1.msra.mxu0 0.0
    %510 = vmatprep.subr.mxu0 0.0
    %511 = vmatpush1.msra.mxu0 0.0
    %512 = vmatprep.subr.mxu0 0.0
    %513 = vmatpush1.msra.mxu0 0.0
    %514 = vmatprep.subr.mxu0 0.0
    %515 = vmatpush1.msra.mxu0 0.0
    %516 = vmatprep.subr.mxu0 0.0
    %517 = vmatpush1.msra.mxu0 0.0
    %518 = vmatprep.subr.mxu0 0.0
    %519 = vmatpush1.msra.mxu0 0.0
    %520 = vmatprep.subr.mxu0 0.0
    %521 = vmatpush1.msra.mxu0 0.0
    %522 = vmatprep.subr.mxu0 0.0
    %523 = vmatpush1.msra.mxu0 0.0
    %524 = vmatprep.subr.mxu0 0.0
    %525 = vmatpush1.msra.mxu0 0.0
    %526 = vmatprep.subr.mxu0 0.0
    %527 = vmatpush1.msra.mxu0 0.0
    %528 = vmatprep.subr.mxu0 0.0
    %529 = vmatpush1.msra.mxu0 0.0
    %530 = vmatprep.subr.mxu0 0.0
    %531 = vmatpush1.msra.mxu0 0.0
    %532 = vmatprep.subr.mxu0 0.0
    %533 = vmatpush1.msra.mxu0 0.0
    %534 = vmatprep.subr.mxu0 0.0
    %535 = vmatpush1.msra.mxu0 0.0
    %536 = vmatprep.subr.mxu0 0.0
    %537 = vmatpush1.msra.mxu0 0.0
    %538 = vmatprep.subr.mxu0 0.0
    %539 = vmatpush1.msra.mxu0 0.0
    %540 = vmatprep.subr.mxu0 0.0
    %541 = vmatpush1.msra.mxu0 0.0
    %542 = vmatprep.subr.mxu0 0.0
    %543 = vmatpush1.msra.mxu0 0.0
    %544 = vmatprep.subr.mxu0 0.0
    %545 = vmatpush1.msra.mxu0 0.0
    %546 = vmatprep.subr.mxu0 0.0
    %547 = vmatpush1.msra.mxu0 0.0
    %548 = vmatprep.subr.mxu0 0.0
    %549 = vmatpush1.msra.mxu0 0.0
    %550 = vmatprep.subr.mxu0 0.0
    %551 = vmatpush1.msra.mxu0 0.0
    %552 = vmatprep.subr.mxu0 0.0
    %553 = vmatpush1.msra.mxu0 0.0
    %554 = vmatprep.mubr.f32.mxu0 0.0
    %555 = vmatmul.mubr.f32.gmra.mrb[0].mxu0 %v488
    %v556 = vpop.f32.mrb[0].mxu0
    %v557 = vadd.f32 0.0, %v556
    %v558 = vpop.f32.mrb[0].mxu0
    %v559 = vadd.f32 0.0, %v558
    %560 = vdwg.mxu0
    %v561 = vadd.f32 %v485, %v557
    %v562 = vadd.f32 %v486, %v559
    %v563 = vxor.u32 %v561, 2147483648
    %v564 = vxor.u32 %v562, 2147483648
    %v565 = vmul.f32 %v563, 1.442695
    %v566 = vpow.pop %v565
    %v567 = vmul.f32 %v564, 1.442695
    %v568 = vpow.pop %v567
    %v569 = vadd.f32 %v566, 1.0
    %v570 = vadd.f32 %v568, 1.0
    %v571 = vrcp.pop %v569
    %v572 = vmul.f32 1.0, %v571
    %v573 = vrcp.pop %v570
    %v574 = vmul.f32 1.0, %v573
    %v575 = vtanh.pop %v561
    %v576 = vtanh.pop %v562
    %577 = vrot.lane.b32.xlu0 %v575, 64
    %v578 = vpop.permute.xlu0 %577
    %579 = vrot.lane.b32.xlu0 %v576, 64
    %v580 = vpop.permute.xlu0 %579
    %v581 = vsel %vm344, %v578, %v580
    %v582 = vsel %vm344, %v580, %v578
    %v583 = vmul.f32 %v572, %v581
    %v584 = vmul.f32 %v574, %v582
    %v585 = vmul.f32 %v572, %v475
    %v586 = vmul.f32 %v574, %v476
    %587 = vrot.lane.b32.xlu0 %v583, 64
    %v588 = vpop.permute.xlu0 %587
    %589 = vrot.lane.b32.xlu0 %v584, 64
    %v590 = vpop.permute.xlu0 %589
    %v591 = vsel %vm344, %v588, %v590
    %v592 = vsel %vm344, %v590, %v588
    %v593 = vadd.f32 %v585, %v591
    %v594 = vadd.f32 %v586, %v592
    %v595 = vtanh.pop %v593
    %v596 = vtanh.pop %v594
    %597 = vrot.lane.b32.xlu0 %v595, 64
    %v598 = vpop.permute.xlu0 %597
    %599 = vrot.lane.b32.xlu0 %v596, 64
    %v600 = vpop.permute.xlu0 %599
    %v601 = vsel %vm344, %v598, %v600
    %v602 = vmul.f32 %v572, %v601
    %v603 = vld [vmem:[#allocation2 + $0x30] sm:$0xff]
    %v604 = vld [vmem:[#allocation2 + $0x38] sm:$0xff]
    %v606 = vsel %vm247, %v602, 0
    %608 = vmatprep.subr.mxu0 %v232
    %609 = vmatpush1.msra.mxu0 %v231
    %610 = vmatprep.subr.mxu0 %v234
    %611 = vmatpush1.msra.mxu0 %v233
    %612 = vmatprep.subr.mxu0 %v236
    %613 = vmatpush1.msra.mxu0 %v235
    %614 = vmatprep.subr.mxu0 %v238
    %615 = vmatpush1.msra.mxu0 %v237
    %616 = vmatprep.subr.mxu0 %v240
    %617 = vmatpush1.msra.mxu0 %v239
    %618 = vmatprep.subr.mxu0 %v242
    %619 = vmatpush1.msra.mxu0 %v241
    %620 = vmatprep.subr.mxu0 %v244
    %621 = vmatpush1.msra.mxu0 %v243
    %622 = vmatprep.subr.mxu0 %v246
    %623 = vmatpush1.msra.mxu0 %v245
    %624 = vmatprep.subr.mxu0 0.0
    %625 = vmatpush1.msra.mxu0 0.0
    %626 = vmatprep.subr.mxu0 0.0
    %627 = vmatpush1.msra.mxu0 0.0
    %628 = vmatprep.subr.mxu0 0.0
    %629 = vmatpush1.msra.mxu0 0.0
    %630 = vmatprep.subr.mxu0 0.0
    %631 = vmatpush1.msra.mxu0 0.0
    %632 = vmatprep.subr.mxu0 0.0
    %633 = vmatpush1.msra.mxu0 0.0
    %634 = vmatprep.subr.mxu0 0.0
    %635 = vmatpush1.msra.mxu0 0.0
    %636 = vmatprep.subr.mxu0 0.0
    %637 = vmatpush1.msra.mxu0 0.0
    %638 = vmatprep.subr.mxu0 0.0
    %639 = vmatpush1.msra.mxu0 0.0
    %640 = vmatprep.subr.mxu0 0.0
    %641 = vmatpush1.msra.mxu0 0.0
    %642 = vmatprep.subr.mxu0 0.0
    %643 = vmatpush1.msra.mxu0 0.0
    %644 = vmatprep.subr.mxu0 0.0
    %645 = vmatpush1.msra.mxu0 0.0
    %646 = vmatprep.subr.mxu0 0.0
    %647 = vmatpush1.msra.mxu0 0.0
    %648 = vmatprep.subr.mxu0 0.0
    %649 = vmatpush1.msra.mxu0 0.0
    %650 = vmatprep.subr.mxu0 0.0
    %651 = vmatpush1.msra.mxu0 0.0
    %652 = vmatprep.subr.mxu0 0.0
    %653 = vmatpush1.msra.mxu0 0.0
    %654 = vmatprep.subr.mxu0 0.0
    %655 = vmatpush1.msra.mxu0 0.0
    %656 = vmatprep.subr.mxu0 0.0
    %657 = vmatpush1.msra.mxu0 0.0
    %658 = vmatprep.subr.mxu0 0.0
    %659 = vmatpush1.msra.mxu0 0.0
    %660 = vmatprep.subr.mxu0 0.0
    %661 = vmatpush1.msra.mxu0 0.0
    %662 = vmatprep.subr.mxu0 0.0
    %663 = vmatpush1.msra.mxu0 0.0
    %664 = vmatprep.subr.mxu0 0.0
    %665 = vmatpush1.msra.mxu0 0.0
    %666 = vmatprep.subr.mxu0 0.0
    %667 = vmatpush1.msra.mxu0 0.0
    %668 = vmatprep.subr.mxu0 0.0
    %669 = vmatpush1.msra.mxu0 0.0
    %670 = vmatprep.subr.mxu0 0.0
    %671 = vmatpush1.msra.mxu0 0.0
    %672 = vmatprep.mubr.f32.mxu0 0.0
    %673 = vmatmul.mubr.f32.gmra.mrb[0].mxu0 %v606
    %v674 = vpop.f32.mrb[0].mxu0
    %v675 = vadd.f32 0.0, %v674
    %v676 = vpop.f32.mrb[0].mxu0
    %v677 = vadd.f32 0.0, %v676
    %678 = vdwg.mxu0
    %v679 = vadd.f32 %v603, %v675
    %v680 = vadd.f32 %v604, %v677
    %v681 = vxor.u32 %v679, 2147483648
    %v682 = vxor.u32 %v680, 2147483648
    %v683 = vmul.f32 %v681, 1.442695
    %v684 = vpow.pop %v683
    %v685 = vmul.f32 %v682, 1.442695
    %v686 = vpow.pop %v685
    %v687 = vadd.f32 %v684, 1.0
    %v688 = vadd.f32 %v686, 1.0
    %v689 = vrcp.pop %v687
    %v690 = vmul.f32 1.0, %v689
    %v691 = vrcp.pop %v688
    %v692 = vmul.f32 1.0, %v691
    %v693 = vtanh.pop %v679
    %v694 = vtanh.pop %v680
    %695 = vrot.lane.b32.xlu0 %v693, 64
    %v696 = vpop.permute.xlu0 %695
    %697 = vrot.lane.b32.xlu0 %v694, 64
    %v698 = vpop.permute.xlu0 %697
    %v699 = vsel %vm344, %v696, %v698
    %v700 = vsel %vm344, %v698, %v696
    %v701 = vmul.f32 %v690, %v699
    %v702 = vmul.f32 %v692, %v700
    %v703 = vmul.f32 %v690, %v593
    %v704 = vmul.f32 %v692, %v594
    %705 = vrot.lane.b32.xlu0 %v701, 64
    %v706 = vpop.permute.xlu0 %705
    %707 = vrot.lane.b32.xlu0 %v702, 64
    %v708 = vpop.permute.xlu0 %707
    %v709 = vsel %vm344, %v706, %v708
    %v710 = vsel %vm344, %v708, %v706
    %v711 = vadd.f32 %v703, %v709
    %v712 = vadd.f32 %v704, %v710
    %v713 = vtanh.pop %v711
    %v714 = vtanh.pop %v712
    %715 = vrot.lane.b32.xlu0 %v713, 64
    %v716 = vpop.permute.xlu0 %715
    %717 = vrot.lane.b32.xlu0 %v714, 64
    %v718 = vpop.permute.xlu0 %717
    %v719 = vsel %vm344, %v716, %v718
    %v720 = vmul.f32 %v690, %v719
    %v721 = vld [vmem:[#allocation2 + $0x40] sm:$0xff]
    %v722 = vld [vmem:[#allocation2 + $0x48] sm:$0xff]
    %v724 = vsel %vm247, %v720, 0
    %726 = vmatprep.subr.mxu0 %v232
    %727 = vmatpush1.msra.mxu0 %v231
    %728 = vmatprep.subr.mxu0 %v234
    %729 = vmatpush1.msra.mxu0 %v233
    %730 = vmatprep.subr.mxu0 %v236
    %731 = vmatpush1.msra.mxu0 %v235
    %732 = vmatprep.subr.mxu0 %v238
    %733 = vmatpush1.msra.mxu0 %v237
    %734 = vmatprep.subr.mxu0 %v240
    %735 = vmatpush1.msra.mxu0 %v239
    %736 = vmatprep.subr.mxu0 %v242
    %737 = vmatpush1.msra.mxu0 %v241
    %738 = vmatprep.subr.mxu0 %v244
    %739 = vmatpush1.msra.mxu0 %v243
    %740 = vmatprep.subr.mxu0 %v246
    %741 = vmatpush1.msra.mxu0 %v245
    %742 = vmatprep.subr.mxu0 0.0
    %743 = vmatpush1.msra.mxu0 0.0
    %744 = vmatprep.subr.mxu0 0.0
    %745 = vmatpush1.msra.mxu0 0.0
    %746 = vmatprep.subr.mxu0 0.0
    %747 = vmatpush1.msra.mxu0 0.0
    %748 = vmatprep.subr.mxu0 0.0
    %749 = vmatpush1.msra.mxu0 0.0
    %750 = vmatprep.subr.mxu0 0.0
    %751 = vmatpush1.msra.mxu0 0.0
    %752 = vmatprep.subr.mxu0 0.0
    %753 = vmatpush1.msra.mxu0 0.0
    %754 = vmatprep.subr.mxu0 0.0
    %755 = vmatpush1.msra.mxu0 0.0
    %756 = vmatprep.subr.mxu0 0.0
    %757 = vmatpush1.msra.mxu0 0.0
    %758 = vmatprep.subr.mxu0 0.0
    %759 = vmatpush1.msra.mxu0 0.0
    %760 = vmatprep.subr.mxu0 0.0
    %761 = vmatpush1.msra.mxu0 0.0
    %762 = vmatprep.subr.mxu0 0.0
    %763 = vmatpush1.msra.mxu0 0.0
    %764 = vmatprep.subr.mxu0 0.0
    %765 = vmatpush1.msra.mxu0 0.0
    %766 = vmatprep.subr.mxu0 0.0
    %767 = vmatpush1.msra.mxu0 0.0
    %768 = vmatprep.subr.mxu0 0.0
    %769 = vmatpush1.msra.mxu0 0.0
    %770 = vmatprep.subr.mxu0 0.0
    %771 = vmatpush1.msra.mxu0 0.0
    %772 = vmatprep.subr.mxu0 0.0
    %773 = vmatpush1.msra.mxu0 0.0
    %774 = vmatprep.subr.mxu0 0.0
    %775 = vmatpush1.msra.mxu0 0.0
    %776 = vmatprep.subr.mxu0 0.0
    %777 = vmatpush1.msra.mxu0 0.0
    %778 = vmatprep.subr.mxu0 0.0
    %779 = vmatpush1.msra.mxu0 0.0
    %780 = vmatprep.subr.mxu0 0.0
    %781 = vmatpush1.msra.mxu0 0.0
    %782 = vmatprep.subr.mxu0 0.0
    %783 = vmatpush1.msra.mxu0 0.0
    %784 = vmatprep.subr.mxu0 0.0
    %785 = vmatpush1.msra.mxu0 0.0
    %786 = vmatprep.subr.mxu0 0.0
    %787 = vmatpush1.msra.mxu0 0.0
    %788 = vmatprep.subr.mxu0 0.0
    %789 = vmatpush1.msra.mxu0 0.0
    %790 = vmatprep.mubr.f32.mxu0 0.0
    %791 = vmatmul.mubr.f32.gmra.mrb[0].mxu0 %v724
    %v792 = vpop.f32.mrb[0].mxu0
    %v793 = vadd.f32 0.0, %v792
    %v794 = vpop.f32.mrb[0].mxu0
    %v795 = vadd.f32 0.0, %v794
    %796 = vdwg.mxu0
    %v797 = vadd.f32 %v721, %v793
    %v798 = vadd.f32 %v722, %v795
    %v799 = vxor.u32 %v797, 2147483648
    %v800 = vxor.u32 %v798, 2147483648
    %v801 = vmul.f32 %v799, 1.442695
    %v802 = vpow.pop %v801
    %v803 = vmul.f32 %v800, 1.442695
    %v804 = vpow.pop %v803
    %v805 = vadd.f32 %v802, 1.0
    %v806 = vadd.f32 %v804, 1.0
    %v807 = vrcp.pop %v805
    %v808 = vmul.f32 1.0, %v807
    %v809 = vrcp.pop %v806
    %v810 = vmul.f32 1.0, %v809
    %v811 = vtanh.pop %v797
    %v812 = vtanh.pop %v798
    %813 = vrot.lane.b32.xlu0 %v811, 64
    %v814 = vpop.permute.xlu0 %813
    %815 = vrot.lane.b32.xlu0 %v812, 64
    %v816 = vpop.permute.xlu0 %815
    %v817 = vsel %vm344, %v814, %v816
    %v818 = vsel %vm344, %v816, %v814
    %v819 = vmul.f32 %v808, %v817
    %v820 = vmul.f32 %v810, %v818
    %v821 = vmul.f32 %v808, %v711
    %v822 = vmul.f32 %v810, %v712
    %823 = vrot.lane.b32.xlu0 %v819, 64
    %v824 = vpop.permute.xlu0 %823
    %825 = vrot.lane.b32.xlu0 %v820, 64
    %v826 = vpop.permute.xlu0 %825
    %v827 = vsel %vm344, %v824, %v826
    %v828 = vsel %vm344, %v826, %v824
    %v829 = vadd.f32 %v821, %v827
    %v830 = vadd.f32 %v822, %v828
    %v831 = vtanh.pop %v829
    %v832 = vtanh.pop %v830
    %833 = vrot.lane.b32.xlu0 %v831, 64
    %v834 = vpop.permute.xlu0 %833
    %835 = vrot.lane.b32.xlu0 %v832, 64
    %v836 = vpop.permute.xlu0 %835
    %v837 = vsel %vm344, %v834, %v836
    %v838 = vmul.f32 %v808, %v837
    %v839 = vld [vmem:[#allocation2 + $0x50] sm:$0xff]
    %v840 = vld [vmem:[#allocation2 + $0x58] sm:$0xff]
    %v842 = vsel %vm247, %v838, 0
    %844 = vmatprep.subr.mxu0 %v232
    %845 = vmatpush1.msra.mxu0 %v231
    %846 = vmatprep.subr.mxu0 %v234
    %847 = vmatpush1.msra.mxu0 %v233
    %848 = vmatprep.subr.mxu0 %v236
    %849 = vmatpush1.msra.mxu0 %v235
    %850 = vmatprep.subr.mxu0 %v238
    %851 = vmatpush1.msra.mxu0 %v237
    %852 = vmatprep.subr.mxu0 %v240
    %853 = vmatpush1.msra.mxu0 %v239
    %854 = vmatprep.subr.mxu0 %v242
    %855 = vmatpush1.msra.mxu0 %v241
    %856 = vmatprep.subr.mxu0 %v244
    %857 = vmatpush1.msra.mxu0 %v243
    %858 = vmatprep.subr.mxu0 %v246
    %859 = vmatpush1.msra.mxu0 %v245
    %860 = vmatprep.subr.mxu0 0.0
    %861 = vmatpush1.msra.mxu0 0.0
    %862 = vmatprep.subr.mxu0 0.0
    %863 = vmatpush1.msra.mxu0 0.0
    %864 = vmatprep.subr.mxu0 0.0
    %865 = vmatpush1.msra.mxu0 0.0
    %866 = vmatprep.subr.mxu0 0.0
    %867 = vmatpush1.msra.mxu0 0.0
    %868 = vmatprep.subr.mxu0 0.0
    %869 = vmatpush1.msra.mxu0 0.0
    %870 = vmatprep.subr.mxu0 0.0
    %871 = vmatpush1.msra.mxu0 0.0
    %872 = vmatprep.subr.mxu0 0.0
    %873 = vmatpush1.msra.mxu0 0.0
    %874 = vmatprep.subr.mxu0 0.0
    %875 = vmatpush1.msra.mxu0 0.0
    %876 = vmatprep.subr.mxu0 0.0
    %877 = vmatpush1.msra.mxu0 0.0
    %878 = vmatprep.subr.mxu0 0.0
    %879 = vmatpush1.msra.mxu0 0.0
    %880 = vmatprep.subr.mxu0 0.0
    %881 = vmatpush1.msra.mxu0 0.0
    %882 = vmatprep.subr.mxu0 0.0
    %883 = vmatpush1.msra.mxu0 0.0
    %884 = vmatprep.subr.mxu0 0.0
    %885 = vmatpush1.msra.mxu0 0.0
    %886 = vmatprep.subr.mxu0 0.0
    %887 = vmatpush1.msra.mxu0 0.0
    %888 = vmatprep.subr.mxu0 0.0
    %889 = vmatpush1.msra.mxu0 0.0
    %890 = vmatprep.subr.mxu0 0.0
    %891 = vmatpush1.msra.mxu0 0.0
    %892 = vmatprep.subr.mxu0 0.0
    %893 = vmatpush1.msra.mxu0 0.0
    %894 = vmatprep.subr.mxu0 0.0
    %895 = vmatpush1.msra.mxu0 0.0
    %896 = vmatprep.subr.mxu0 0.0
    %897 = vmatpush1.msra.mxu0 0.0
    %898 = vmatprep.subr.mxu0 0.0
    %899 = vmatpush1.msra.mxu0 0.0
    %900 = vmatprep.subr.mxu0 0.0
    %901 = vmatpush1.msra.mxu0 0.0
    %902 = vmatprep.subr.mxu0 0.0
    %903 = vmatpush1.msra.mxu0 0.0
    %904 = vmatprep.subr.mxu0 0.0
    %905 = vmatpush1.msra.mxu0 0.0
    %906 = vmatprep.subr.mxu0 0.0
    %907 = vmatpush1.msra.mxu0 0.0
    %908 = vmatprep.mubr.f32.mxu0 0.0
    %909 = vmatmul.mubr.f32.gmra.mrb[0].mxu0 %v842
    %v910 = vpop.f32.mrb[0].mxu0
    %v911 = vadd.f32 0.0, %v910
    %v912 = vpop.f32.mrb[0].mxu0
    %v913 = vadd.f32 0.0, %v912
    %914 = vdwg.mxu0
    %v915 = vadd.f32 %v839, %v911
    %v916 = vadd.f32 %v840, %v913
    %v917 = vxor.u32 %v915, 2147483648
    %v918 = vxor.u32 %v916, 2147483648
    %v919 = vmul.f32 %v917, 1.442695
    %v920 = vpow.pop %v919
    %v921 = vmul.f32 %v918, 1.442695
    %v922 = vpow.pop %v921
    %v923 = vadd.f32 %v920, 1.0
    %v924 = vadd.f32 %v922, 1.0
    %v925 = vrcp.pop %v923
    %v926 = vmul.f32 1.0, %v925
    %v927 = vrcp.pop %v924
    %v928 = vmul.f32 1.0, %v927
    %v929 = vtanh.pop %v915
    %v930 = vtanh.pop %v916
    %931 = vrot.lane.b32.xlu0 %v929, 64
    %v932 = vpop.permute.xlu0 %931
    %933 = vrot.lane.b32.xlu0 %v930, 64
    %v934 = vpop.permute.xlu0 %933
    %v935 = vsel %vm344, %v932, %v934
    %v936 = vsel %vm344, %v934, %v932
    %v937 = vmul.f32 %v926, %v935
    %v938 = vmul.f32 %v928, %v936
    %v939 = vmul.f32 %v926, %v829
    %v940 = vmul.f32 %v928, %v830
    %941 = vrot.lane.b32.xlu0 %v937, 64
    %v942 = vpop.permute.xlu0 %941
    %943 = vrot.lane.b32.xlu0 %v938, 64
    %v944 = vpop.permute.xlu0 %943
    %v945 = vsel %vm344, %v942, %v944
    %v946 = vsel %vm344, %v944, %v942
    %v947 = vadd.f32 %v939, %v945
    %v948 = vadd.f32 %v940, %v946
    %v949 = vtanh.pop %v947
    %v950 = vtanh.pop %v948
    %951 = vrot.lane.b32.xlu0 %v949, 64
    %v952 = vpop.permute.xlu0 %951
    %953 = vrot.lane.b32.xlu0 %v950, 64
    %v954 = vpop.permute.xlu0 %953
    %v955 = vsel %vm344, %v952, %v954
    %v956 = vmul.f32 %v926, %v955
    %v957 = vld [vmem:[#allocation2 + $0x60] sm:$0xff]
    %v958 = vld [vmem:[#allocation2 + $0x68] sm:$0xff]
    %v960 = vsel %vm247, %v956, 0
    %962 = vmatprep.subr.mxu0 %v232
    %963 = vmatpush1.msra.mxu0 %v231
    %964 = vmatprep.subr.mxu0 %v234
    %965 = vmatpush1.msra.mxu0 %v233
    %966 = vmatprep.subr.mxu0 %v236
    %967 = vmatpush1.msra.mxu0 %v235
    %968 = vmatprep.subr.mxu0 %v238
    %969 = vmatpush1.msra.mxu0 %v237
    %970 = vmatprep.subr.mxu0 %v240
    %971 = vmatpush1.msra.mxu0 %v239
    %972 = vmatprep.subr.mxu0 %v242
    %973 = vmatpush1.msra.mxu0 %v241
    %974 = vmatprep.subr.mxu0 %v244
    %975 = vmatpush1.msra.mxu0 %v243
    %976 = vmatprep.subr.mxu0 %v246
    %977 = vmatpush1.msra.mxu0 %v245
    %978 = vmatprep.subr.mxu0 0.0
    %979 = vmatpush1.msra.mxu0 0.0
    %980 = vmatprep.subr.mxu0 0.0
    %981 = vmatpush1.msra.mxu0 0.0
    %982 = vmatprep.subr.mxu0 0.0
    %983 = vmatpush1.msra.mxu0 0.0
    %984 = vmatprep.subr.mxu0 0.0
    %985 = vmatpush1.msra.mxu0 0.0
    %986 = vmatprep.subr.mxu0 0.0
    %987 = vmatpush1.msra.mxu0 0.0
    %988 = vmatprep.subr.mxu0 0.0
    %989 = vmatpush1.msra.mxu0 0.0
    %990 = vmatprep.subr.mxu0 0.0
    %991 = vmatpush1.msra.mxu0 0.0
    %992 = vmatprep.subr.mxu0 0.0
    %993 = vmatpush1.msra.mxu0 0.0
    %994 = vmatprep.subr.mxu0 0.0
    %995 = vmatpush1.msra.mxu0 0.0
    %996 = vmatprep.subr.mxu0 0.0
    %997 = vmatpush1.msra.mxu0 0.0
    %998 = vmatprep.subr.mxu0 0.0
    %999 = vmatpush1.msra.mxu0 0.0
    %1000 = vmatprep.subr.mxu0 0.0
    %1001 = vmatpush1.msra.mxu0 0.0
    %1002 = vmatprep.subr.mxu0 0.0
    %1003 = vmatpush1.msra.mxu0 0.0
    %1004 = vmatprep.subr.mxu0 0.0
    %1005 = vmatpush1.msra.mxu0 0.0
    %1006 = vmatprep.subr.mxu0 0.0
    %1007 = vmatpush1.msra.mxu0 0.0
    %1008 = vmatprep.subr.mxu0 0.0
    %1009 = vmatpush1.msra.mxu0 0.0
    %1010 = vmatprep.subr.mxu0 0.0
    %1011 = vmatpush1.msra.mxu0 0.0
    %1012 = vmatprep.subr.mxu0 0.0
    %1013 = vmatpush1.msra.mxu0 0.0
    %1014 = vmatprep.subr.mxu0 0.0
    %1015 = vmatpush1.msra.mxu0 0.0
    %1016 = vmatprep.subr.mxu0 0.0
    %1017 = vmatpush1.msra.mxu0 0.0
    %1018 = vmatprep.subr.mxu0 0.0
    %1019 = vmatpush1.msra.mxu0 0.0
    %1020 = vmatprep.subr.mxu0 0.0
    %1021 = vmatpush1.msra.mxu0 0.0
    %1022 = vmatprep.subr.mxu0 0.0
    %1023 = vmatpush1.msra.mxu0 0.0
    %1024 = vmatprep.subr.mxu0 0.0
    %1025 = vmatpush1.msra.mxu0 0.0
    %1026 = vmatprep.mubr.f32.mxu0 0.0
    %1027 = vmatmul.mubr.f32.gmra.mrb[0].mxu0 %v960
    %v1028 = vpop.f32.mrb[0].mxu0
    %v1029 = vadd.f32 0.0, %v1028
    %v1030 = vpop.f32.mrb[0].mxu0
    %v1031 = vadd.f32 0.0, %v1030
    %1032 = vdwg.mxu0
    %v1033 = vadd.f32 %v957, %v1029
    %v1034 = vadd.f32 %v958, %v1031
    %v1035 = vxor.u32 %v1033, 2147483648
    %v1036 = vxor.u32 %v1034, 2147483648
    %v1037 = vmul.f32 %v1035, 1.442695
    %v1038 = vpow.pop %v1037
    %v1039 = vmul.f32 %v1036, 1.442695
    %v1040 = vpow.pop %v1039
    %v1041 = vadd.f32 %v1038, 1.0
    %v1042 = vadd.f32 %v1040, 1.0
    %v1043 = vrcp.pop %v1041
    %v1044 = vmul.f32 1.0, %v1043
    %v1045 = vrcp.pop %v1042
    %v1046 = vmul.f32 1.0, %v1045
    %v1047 = vtanh.pop %v1033
    %v1048 = vtanh.pop %v1034
    %1049 = vrot.lane.b32.xlu0 %v1047, 64
    %v1050 = vpop.permute.xlu0 %1049
    %1051 = vrot.lane.b32.xlu0 %v1048, 64
    %v1052 = vpop.permute.xlu0 %1051
    %v1053 = vsel %vm344, %v1050, %v1052
    %v1054 = vsel %vm344, %v1052, %v1050
    %v1055 = vmul.f32 %v1044, %v1053
    %v1056 = vmul.f32 %v1046, %v1054
    %v1057 = vmul.f32 %v1044, %v947
    %v1058 = vmul.f32 %v1046, %v948
    %1059 = vrot.lane.b32.xlu0 %v1055, 64
    %v1060 = vpop.permute.xlu0 %1059
    %1061 = vrot.lane.b32.xlu0 %v1056, 64
    %v1062 = vpop.permute.xlu0 %1061
    %v1063 = vsel %vm344, %v1060, %v1062
    %v1064 = vsel %vm344, %v1062, %v1060
    %v1065 = vadd.f32 %v1057, %v1063
    %v1066 = vadd.f32 %v1058, %v1064
    %v1067 = vtanh.pop %v1065
    %v1068 = vtanh.pop %v1066
    %1069 = vrot.lane.b32.xlu0 %v1067, 64
    %v1070 = vpop.permute.xlu0 %1069
    %1071 = vrot.lane.b32.xlu0 %v1068, 64
    %v1072 = vpop.permute.xlu0 %1071
    %v1073 = vsel %vm344, %v1070, %v1072
    %v1074 = vmul.f32 %v1044, %v1073
    %v1075 = vld [vmem:[#allocation2 + $0x70] sm:$0xff]
    %v1076 = vld [vmem:[#allocation2 + $0x78] sm:$0xff]
    %v1078 = vsel %vm247, %v1074, 0
    %1080 = vmatprep.subr.mxu0 %v232
    %1081 = vmatpush1.msra.mxu0 %v231
    %1082 = vmatprep.subr.mxu0 %v234
    %1083 = vmatpush1.msra.mxu0 %v233
    %1084 = vmatprep.subr.mxu0 %v236
    %1085 = vmatpush1.msra.mxu0 %v235
    %1086 = vmatprep.subr.mxu0 %v238
    %1087 = vmatpush1.msra.mxu0 %v237
    %1088 = vmatprep.subr.mxu0 %v240
    %1089 = vmatpush1.msra.mxu0 %v239
    %1090 = vmatprep.subr.mxu0 %v242
    %1091 = vmatpush1.msra.mxu0 %v241
    %1092 = vmatprep.subr.mxu0 %v244
    %1093 = vmatpush1.msra.mxu0 %v243
    %1094 = vmatprep.subr.mxu0 %v246
    %1095 = vmatpush1.msra.mxu0 %v245
    %1096 = vmatprep.subr.mxu0 0.0
    %1097 = vmatpush1.msra.mxu0 0.0
    %1098 = vmatprep.subr.mxu0 0.0
    %1099 = vmatpush1.msra.mxu0 0.0
    %1100 = vmatprep.subr.mxu0 0.0
    %1101 = vmatpush1.msra.mxu0 0.0
    %1102 = vmatprep.subr.mxu0 0.0
    %1103 = vmatpush1.msra.mxu0 0.0
    %1104 = vmatprep.subr.mxu0 0.0
    %1105 = vmatpush1.msra.mxu0 0.0
    %1106 = vmatprep.subr.mxu0 0.0
    %1107 = vmatpush1.msra.mxu0 0.0
    %1108 = vmatprep.subr.mxu0 0.0
    %1109 = vmatpush1.msra.mxu0 0.0
    %1110 = vmatprep.subr.mxu0 0.0
    %1111 = vmatpush1.msra.mxu0 0.0
    %1112 = vmatprep.subr.mxu0 0.0
    %1113 = vmatpush1.msra.mxu0 0.0
    %1114 = vmatprep.subr.mxu0 0.0
    %1115 = vmatpush1.msra.mxu0 0.0
    %1116 = vmatprep.subr.mxu0 0.0
    %1117 = vmatpush1.msra.mxu0 0.0
    %1118 = vmatprep.subr.mxu0 0.0
    %1119 = vmatpush1.msra.mxu0 0.0
    %1120 = vmatprep.subr.mxu0 0.0
    %1121 = vmatpush1.msra.mxu0 0.0
    %1122 = vmatprep.subr.mxu0 0.0
    %1123 = vmatpush1.msra.mxu0 0.0
    %1124 = vmatprep.subr.mxu0 0.0
    %1125 = vmatpush1.msra.mxu0 0.0
    %1126 = vmatprep.subr.mxu0 0.0
    %1127 = vmatpush1.msra.mxu0 0.0
    %1128 = vmatprep.subr.mxu0 0.0
    %1129 = vmatpush1.msra.mxu0 0.0
    %1130 = vmatprep.subr.mxu0 0.0
    %1131 = vmatpush1.msra.mxu0 0.0
    %1132 = vmatprep.subr.mxu0 0.0
    %1133 = vmatpush1.msra.mxu0 0.0
    %1134 = vmatprep.subr.mxu0 0.0
    %1135 = vmatpush1.msra.mxu0 0.0
    %1136 = vmatprep.subr.mxu0 0.0
    %1137 = vmatpush1.msra.mxu0 0.0
    %1138 = vmatprep.subr.mxu0 0.0
    %1139 = vmatpush1.msra.mxu0 0.0
    %1140 = vmatprep.subr.mxu0 0.0
    %1141 = vmatpush1.msra.mxu0 0.0
    %1142 = vmatprep.subr.mxu0 0.0
    %1143 = vmatpush1.msra.mxu0 0.0
    %1144 = vmatprep.mubr.f32.mxu0 0.0
    %1145 = vmatmul.mubr.f32.gmra.mrb[0].mxu0 %v1078
    %v1146 = vpop.f32.mrb[0].mxu0
    %v1147 = vadd.f32 0.0, %v1146
    %v1148 = vpop.f32.mrb[0].mxu0
    %v1149 = vadd.f32 0.0, %v1148
    %1150 = vdwg.mxu0
    %v1151 = vadd.f32 %v1075, %v1147
    %v1152 = vadd.f32 %v1076, %v1149
    %v1153 = vxor.u32 %v1151, 2147483648
    %v1154 = vxor.u32 %v1152, 2147483648
    %v1155 = vmul.f32 %v1153, 1.442695
    %v1156 = vpow.pop %v1155
    %v1157 = vmul.f32 %v1154, 1.442695
    %v1158 = vpow.pop %v1157
    %v1159 = vadd.f32 %v1156, 1.0
    %v1160 = vadd.f32 %v1158, 1.0
    %v1161 = vrcp.pop %v1159
    %v1162 = vmul.f32 1.0, %v1161
    %v1163 = vrcp.pop %v1160
    %v1164 = vmul.f32 1.0, %v1163
    %v1165 = vtanh.pop %v1151
    %v1166 = vtanh.pop %v1152
    %1167 = vrot.lane.b32.xlu0 %v1165, 64
    %v1168 = vpop.permute.xlu0 %1167
    %1169 = vrot.lane.b32.xlu0 %v1166, 64
    %v1170 = vpop.permute.xlu0 %1169
    %v1171 = vsel %vm344, %v1168, %v1170
    %v1172 = vsel %vm344, %v1170, %v1168
    %v1173 = vmul.f32 %v1162, %v1171
    %v1174 = vmul.f32 %v1164, %v1172
    %v1175 = vmul.f32 %v1162, %v1065
    %v1176 = vmul.f32 %v1164, %v1066
    %1177 = vrot.lane.b32.xlu0 %v1173, 64
    %v1178 = vpop.permute.xlu0 %1177
    %1179 = vrot.lane.b32.xlu0 %v1174, 64
    %v1180 = vpop.permute.xlu0 %1179
    %v1181 = vsel %vm344, %v1178, %v1180
    %v1182 = vsel %vm344, %v1180, %v1178
    %v1183 = vadd.f32 %v1175, %v1181
    %v1184 = vadd.f32 %v1176, %v1182
    %v1185 = vtanh.pop %v1183
    %v1186 = vtanh.pop %v1184
    %1187 = vrot.lane.b32.xlu0 %v1185, 64
    %v1188 = vpop.permute.xlu0 %1187
    %1189 = vrot.lane.b32.xlu0 %v1186, 64
    %v1190 = vpop.permute.xlu0 %1189
    %v1191 = vsel %vm344, %v1188, %v1190
    %v1192 = vmul.f32 %v1162, %v1191
    %v1193 = vld [vmem:[%s6] sm:$0xff]
    %v1194 = vld [vmem:[%s6 + $0x8] sm:$0xff]
    %v1195 = vld [vmem:[%s6 + $0x10] sm:$0xff]
    %v1196 = vld [vmem:[%s6 + $0x18] sm:$0xff]
    %v1197 = vld [vmem:[%s6 + $0x20] sm:$0xff]
    %v1198 = vld [vmem:[%s6 + $0x28] sm:$0xff]
    %v1199 = vld [vmem:[%s6 + $0x30] sm:$0xff]
    %v1200 = vld [vmem:[%s6 + $0x38] sm:$0xff]
    %v1201 = vld [vmem:[%s7] sm:$0x1]
    %v1203 = vlaneseq
    %v1204 = vshrl.u32 %v1203, 7
    %v1205 = vsub.s32 0, %v1204
    %v1206 = vrot.slane %v1201, %v1205
    %v1209 = vsel %vm247, %v1192, 0
    %1211 = vmatprep.subr.mxu0 0.0
    %1212 = vmatpush1.msra.mxu0 %v1193
    %1213 = vmatprep.subr.mxu0 0.0
    %1214 = vmatpush1.msra.mxu0 %v1194
    %1215 = vmatprep.subr.mxu0 0.0
    %1216 = vmatpush1.msra.mxu0 %v1195
    %1217 = vmatprep.subr.mxu0 0.0
    %1218 = vmatpush1.msra.mxu0 %v1196
    %1219 = vmatprep.subr.mxu0 0.0
    %1220 = vmatpush1.msra.mxu0 %v1197
    %1221 = vmatprep.subr.mxu0 0.0
    %1222 = vmatpush1.msra.mxu0 %v1198
    %1223 = vmatprep.subr.mxu0 0.0
    %1224 = vmatpush1.msra.mxu0 %v1199
    %1225 = vmatprep.subr.mxu0 0.0
    %1226 = vmatpush1.msra.mxu0 %v1200
    %1227 = vmatprep.subr.mxu0 0.0
    %1228 = vmatpush1.msra.mxu0 0.0
    %1229 = vmatprep.subr.mxu0 0.0
    %1230 = vmatpush1.msra.mxu0 0.0
    %1231 = vmatprep.subr.mxu0 0.0
    %1232 = vmatpush1.msra.mxu0 0.0
    %1233 = vmatprep.subr.mxu0 0.0
    %1234 = vmatpush1.msra.mxu0 0.0
    %1235 = vmatprep.subr.mxu0 0.0
    %1236 = vmatpush1.msra.mxu0 0.0
    %1237 = vmatprep.subr.mxu0 0.0
    %1238 = vmatpush1.msra.mxu0 0.0
    %1239 = vmatprep.subr.mxu0 0.0
    %1240 = vmatpush1.msra.mxu0 0.0
    %1241 = vmatprep.subr.mxu0 0.0
    %1242 = vmatpush1.msra.mxu0 0.0
    %1243 = vmatprep.subr.mxu0 0.0
    %1244 = vmatpush1.msra.mxu0 0.0
    %1245 = vmatprep.subr.mxu0 0.0
    %1246 = vmatpush1.msra.mxu0 0.0
    %1247 = vmatprep.subr.mxu0 0.0
    %1248 = vmatpush1.msra.mxu0 0.0
    %1249 = vmatprep.subr.mxu0 0.0
    %1250 = vmatpush1.msra.mxu0 0.0
    %1251 = vmatprep.subr.mxu0 0.0
    %1252 = vmatpush1.msra.mxu0 0.0
    %1253 = vmatprep.subr.mxu0 0.0
    %1254 = vmatpush1.msra.mxu0 0.0
    %1255 = vmatprep.subr.mxu0 0.0
    %1256 = vmatpush1.msra.mxu0 0.0
    %1257 = vmatprep.subr.mxu0 0.0
    %1258 = vmatpush1.msra.mxu0 0.0
    %1259 = vmatprep.subr.mxu0 0.0
    %1260 = vmatpush1.msra.mxu0 0.0
    %1261 = vmatprep.subr.mxu0 0.0
    %1262 = vmatpush1.msra.mxu0 0.0
    %1263 = vmatprep.subr.mxu0 0.0
    %1264 = vmatpush1.msra.mxu0 0.0
    %1265 = vmatprep.subr.mxu0 0.0
    %1266 = vmatpush1.msra.mxu0 0.0
    %1267 = vmatprep.subr.mxu0 0.0
    %1268 = vmatpush1.msra.mxu0 0.0
    %1269 = vmatprep.subr.mxu0 0.0
    %1270 = vmatpush1.msra.mxu0 0.0
    %1271 = vmatprep.subr.mxu0 0.0
    %1272 = vmatpush1.msra.mxu0 0.0
    %1273 = vmatprep.subr.mxu0 0.0
    %1274 = vmatpush1.msra.mxu0 0.0
    %1275 = vmatprep.mubr.f32.mxu0 0.0
    %1276 = vmatmul.mubr.f32.gmra.mrb[0].mxu0 %v1209
    %v1277 = vpop.f32.mrb[0].mxu0
    %v1278 = vadd.f32 %v1206, %v1277
    %v1279 = vpop.f32.mrb[0].mxu0
    %1280 = vdwg.mxu0
    %vm1281 = vcmask 130048
    %v1282 = vsel %vm1281, %v1278, -inf
    %1283 = vmax.xlane.f32.xlu0 %v1282
    %v1284 = vpop.xlane.xlu0 %1283
    %v1285 = vsub.f32 %v1278, %v1284
    %v1286 = vmul.f32 %v1285, 1.442695
    %v1287 = vpow.pop %v1286
    %v1288 = vsel %vm1281, %v1287, 0.0
    %1289 = vadd.xlane.f32.xlu0 %v1288
    %v1290 = vpop.xlane.xlu0 %1289
    %v1291 = vlog2.pop %v1290
    %v1292 = vmul.f32 %v1291, 0.6931472
    %v1293 = vsub.f32 %v1285, %v1292
    %1294 = vst.msk [vmem:[#allocation6] sm:$0xff] %vm1281, %v1293
    // Predicated region
    $region38: #{tpu_custom_call.1} parent=1 // pred_check
      _
    $region39: #{tpu_custom_call.1} parent=1 // pred_check_branch
      %1296 = sbr.rel (0) target = $region41
    $region40: #{tpu_custom_call.1} parent=1 // pred_region
      %s1298 = ssub.s32 128, 128
      %1299 = vsyncadd [#allocation5], %s1298
      %s1301 = sshll.u32 [#allocation6], 4
      %s1302 = int_to_ptr.vmem [resolvable:$true] %s1301
      %1304 = dma.vmem_to_hbm [thread:$0]  %s1302, 128, %s8, [#allocation5]
    $region41: #{tpu_custom_call.1} parent=1 // pred_fallthru
      _
    // Predicated region
    $region42: #{tpu_custom_call.1} parent=1 // pred_check
      _
    $region43: #{tpu_custom_call.1} parent=1 // pred_check_branch
      %1306 = sbr.rel (0) target = $region45
    $region44: #{tpu_custom_call.1} parent=1 // pred_region
      %1307 = dma.done [#allocation5], 128
    $region45: #{tpu_custom_call.1} parent=1 // pred_fallthru
      _
    %1308 = vsyncpa [#allocation4], 1
    %1309 = vsyncpa [#allocation5], 1

</llo_original>
